<compile_context>
chip_gen: v5e
topology: v5e:2x2
jax: 0.10.0
libtpu: 0.0.40
codegen_flags: <defaults>
</compile_context>

<pallas_src>
import math
from functools import partial

import jax
import jax.numpy as jnp
from jax.experimental import pallas as pl
from jax.experimental.pallas import tpu as pltpu


# ----------------------------------------------------------------------------
# In-kernel helpers
# ----------------------------------------------------------------------------
def _layer_norm(x, w, b, eps=1e-5):
    mu = jnp.mean(x, axis=-1, keepdims=True)
    xc = x - mu
    var = jnp.mean(xc * xc, axis=-1, keepdims=True)        # biased, like torch
    return xc * jax.lax.rsqrt(var + eps) * w + b


# ----------------------------------------------------------------------------
# Fused kernel: the whole encoder stack.  grid = (num_layers,).
# ----------------------------------------------------------------------------
def fused_encoder_kernel(
    x_ref,                              # (N, S, D)   input activations (used at layer 0)
    wq_ref, bq_ref,                     # (1, H*N, D, hd), (1, H*N, 1, hd)  (q-scale folded in)
    wk_ref, bk_ref,                     # (1, H*N, D, hd), (1, H*N, 1, hd)
    wv_ref, bv_ref,                     # (1, H*N, D, hd), (1, H*N, 1, hd)
    wo_ref, bo_ref,                     # (1, H*N, hd, D), (1, 1, 1, D)
    w1_ref, b1_ref,                     # (1, N, D, F),    (1, 1, 1, F)
    w2_ref, b2_ref,                     # (1, N, F, D),    (1, 1, 1, D)
    n1w_ref, n1b_ref,                   # (1, 1, 1, D)
    n2w_ref, n2b_ref,                   # (1, 1, 1, D)
    out_ref,                            # (N, S, D)   final activations (written at last layer)
    attn_ref,                           # (1, N, S, S) head-averaged attention for this layer
    x_scr,                              # VMEM (N, S, D) f32 — activation resident across layers
    *, nhead, compute_dtype,
):
    layer = pl.program_id(0)
    N, S, D = x_scr.shape
    H = nhead

    @pl.when(layer == 0)
    def _():
        x_scr[...] = x_ref[...].astype(jnp.float32)

    x = x_scr[...]                                          # (N, S, D) f32

    def bmm(spec, a, b):
        # all MXU matmuls in compute_dtype with f32 accumulation
        return jnp.einsum(spec, a.astype(compute_dtype), b.astype(compute_dtype),
                          preferred_element_type=jnp.float32)

    # --- multi-head self-attention: heads folded into the batch axis --------
    # batch index b = h*N + n; the per-head projection weights were replicated
    # over n in the wrapper, so q/k/v come out head-major with no in-kernel
    # transpose, lane-slicing or concatenate.
    xb = jnp.concatenate([x] * H, axis=0)                   # (H*N, S, D)
    q = bmm('bsd,bde->bse', xb, wq_ref[0]) + bq_ref[0]      # (H*N, S, hd), pre-scaled
    k = bmm('bsd,bde->bse', xb, wk_ref[0]) + bk_ref[0]
    v = bmm('bsd,bde->bse', xb, wv_ref[0]) + bv_ref[0]

    s = bmm('bqd,bkd->bqk', q, k)                           # (H*N, S, S) f32
    m = jnp.max(s, axis=-1, keepdims=True)
    e = jnp.exp(s - m)                                      # softmax kept in f32
    p = e * pl.reciprocal(jnp.sum(e, axis=-1, keepdims=True), approx=True)

    # head-averaged attention weights -> (N, S, S) (cheap leading-dim block adds)
    attn = p[0:N]
    for h in range(1, H):
        attn = attn + p[h * N:(h + 1) * N]
    attn_ref[0] = (attn * (1.0 / H)).astype(attn_ref.dtype)

    ctx = bmm('bqk,bkd->bqd', p, v)                         # (H*N, S, hd)
    proj = bmm('bsd,bde->bse', ctx, wo_ref[0])              # (H*N, S, D)  per-head out-proj
    attn_out = proj[0:N]
    for h in range(1, H):                                   # sum over heads (no transpose)
        attn_out = attn_out + proj[h * N:(h + 1) * N]
    attn_out = attn_out + bo_ref[0]

    x1 = _layer_norm(x + attn_out, n1w_ref[0], n1b_ref[0])

    # --- position-wise feed-forward over all tokens (batched over N) --------
    h1 = jnp.maximum(bmm('nsd,ndf->nsf', x1, w1_ref[0]) + b1_ref[0], 0.0)
    ff = bmm('nsf,nfd->nsd', h1, w2_ref[0]) + b2_ref[0]
    x2 = _layer_norm(x1 + ff, n2w_ref[0], n2b_ref[0])

    x_scr[...] = x2                                         # carry to next layer

    @pl.when(layer == pl.num_programs(0) - 1)
    def _():
        out_ref[...] = x2.astype(out_ref.dtype)


# ----------------------------------------------------------------------------
# Wrapper-side parameter preparation (runs once, at the XLA level — free).
# ----------------------------------------------------------------------------
def _prepare_stacked_params(layer_params, d_model, nhead, n_batch):
    D, H, N = d_model, nhead, n_batch
    hd = D // H
    scale = 1.0 / math.sqrt(hd)

    def prep(p):
        F = p["l1w"].shape[0]
        wq, wk, wv = p["ipw"][:D], p["ipw"][D:2 * D], p["ipw"][2 * D:]
        bq, bk, bv = p["ipb"][:D], p["ipb"][D:2 * D], p["ipb"][2 * D:]

        def head_w(w, sc=1.0):      # torch (D_out, D_in) -> pre-transposed (H, D_in, hd)
            return w.T.reshape(D, H, hd).transpose(1, 0, 2) * sc

        def head_b(b, sc=1.0):
            return b.reshape(H, 1, hd) * sc

        rep = lambda a: jnp.repeat(a, N, axis=0)            # head h -> rows h*N .. h*N+N-1
        return {
            "wq": rep(head_w(wq, scale)), "bq": rep(head_b(bq, scale)),
            "wk": rep(head_w(wk)),        "bk": rep(head_b(bk)),
            "wv": rep(head_w(wv)),        "bv": rep(head_b(bv)),
            "wo": rep(p["opw"].T.reshape(H, hd, D)),
            "bo": p["opb"].reshape(1, 1, D),
            "w1": jnp.broadcast_to(p["l1w"].T[None], (N, D, F)),
            "b1": p["l1b"].reshape(1, 1, F),
            "w2": jnp.broadcast_to(p["l2w"].T[None], (N, F, D)),
            "b2": p["l2b"].reshape(1, 1, D),
            "n1w": p["n1w"].reshape(1, 1, D), "n1b": p["n1b"].reshape(1, 1, D),
            "n2w": p["n2w"].reshape(1, 1, D), "n2b": p["n2b"].reshape(1, 1, D),
        }

    per_layer = [prep(p) for p in layer_params]
    return {k: jnp.stack([d[k] for d in per_layer]) for k in per_layer[0]}


# ----------------------------------------------------------------------------
# Public wrapper.
# ----------------------------------------------------------------------------
@partial(jax.jit, static_argnames=("nhead", "compute_dtype"))
def transformer_encoder_pallas(src_snd, layer_params, nhead, norm_params=None,
                               compute_dtype=jnp.float32):
    """src_snd: (S, N, D) (PyTorch layout).  Returns (output (S,N,D), [attn (N,S,S)] * L)."""
    S, N, D = src_snd.shape
    L = len(layer_params)
    H = nhead
    assert D % H == 0
    hd = D // H
    F = layer_params[0]["l1w"].shape[0]

    x = jnp.transpose(src_snd, (1, 0, 2))                   # -> (N, S, D)
    st = _prepare_stacked_params(layer_params, D, H, N)

    def stacked_spec(shape):                                # one layer's block of a stacked array
        nd = len(shape)
        return pl.BlockSpec((1,) + tuple(shape), lambda l, _nd=nd: (l,) + (0,) * _nd)

    in_specs = [
        pl.BlockSpec((N, S, D), lambda l: (0, 0, 0)),                   # activations
        stacked_spec((H * N, D, hd)), stacked_spec((H * N, 1, hd)),     # wq, bq
        stacked_spec((H * N, D, hd)), stacked_spec((H * N, 1, hd)),     # wk, bk
        stacked_spec((H * N, D, hd)), stacked_spec((H * N, 1, hd)),     # wv, bv
        stacked_spec((H * N, hd, D)), stacked_spec((1, 1, D)),          # wo, bo
        stacked_spec((N, D, F)),      stacked_spec((1, 1, F)),          # w1, b1
        stacked_spec((N, F, D)),      stacked_spec((1, 1, D)),          # w2, b2
        stacked_spec((1, 1, D)), stacked_spec((1, 1, D)),               # norm1
        stacked_spec((1, 1, D)), stacked_spec((1, 1, D)),               # norm2
    ]
    out_specs = (
        pl.BlockSpec((N, S, D), lambda l: (0, 0, 0)),                   # resident activations
        pl.BlockSpec((1, N, S, S), lambda l: (l, 0, 0, 0)),             # per-layer attention
    )
    out_shape = (
        jax.ShapeDtypeStruct((N, S, D), jnp.float32),
        jax.ShapeDtypeStruct((L, N, S, S), jnp.float32),
    )

    out_nsd, attn_all = pl.pallas_call(
        partial(fused_encoder_kernel, nhead=H, compute_dtype=compute_dtype),
        grid=(L,),
        in_specs=in_specs,
        out_specs=out_specs,
        out_shape=out_shape,
        scratch_shapes=[pltpu.VMEM((N, S, D), jnp.float32)],
        input_output_aliases={0: 0},        # reuse the activation buffer for the output
        compiler_params=pltpu.CompilerParams(
            dimension_semantics=("arbitrary",),   # layers are sequential (VMEM-carried state)
        ),
    )(
        x,
        st["wq"], st["bq"], st["wk"], st["bk"], st["wv"], st["bv"],
        st["wo"], st["bo"], st["w1"], st["b1"], st["w2"], st["b2"],
        st["n1w"], st["n1b"], st["n2w"], st["n2b"],
    )

    out = jnp.transpose(out_nsd, (1, 0, 2))                 # back to (S, N, D)
    if norm_params is not None:                             # optional final nn.LayerNorm
        w, b = norm_params
        mu = out.mean(-1, keepdims=True)
        var = ((out - mu) ** 2).mean(-1, keepdims=True)
        out = (out - mu) * jax.lax.rsqrt(var + 1e-5) * w + b
    return out, [attn_all[i] for i in range(L)]


# ----------------------------------------------------------------------------
# Pure-JAX reference (correctness sanity check).
# ----------------------------------------------------------------------------
def encoder_layer_ref(x_nsd, p, nhead):
    N, S, D = x_nsd.shape
    hd = D // nhead
    qkv = x_nsd @ p["ipw"].T + p["ipb"]
    q, k, v = qkv[..., :D] / math.sqrt(hd), qkv[..., D:2 * D], qkv[..., 2 * D:]
    rh = lambda t: t.reshape(N, S, nhead, hd).transpose(0, 2, 1, 3)
    q, k, v = rh(q), rh(k), rh(v)
    scores = jnp.einsum("nhqd,nhkd->nhqk", q, k)
    p_attn = jax.nn.softmax(scores, axis=-1)
    ctx = jnp.einsum("nhqk,nhkd->nhqd", p_attn, v).transpose(0, 2, 1, 3).reshape(N, S, D)
    attn_out = ctx @ p["opw"].T + p["opb"]

    def ln(x, w, b):
        mu = x.mean(-1, keepdims=True)
        var = ((x - mu) ** 2).mean(-1, keepdims=True)
        return (x - mu) / jnp.sqrt(var + 1e-5) * w + b

    x1 = ln(x_nsd + attn_out, p["n1w"], p["n1b"])
    ff = jnp.maximum(x1 @ p["l1w"].T + p["l1b"], 0.0) @ p["l2w"].T + p["l2b"]
    x2 = ln(x1 + ff, p["n2w"], p["n2b"])
    return x2, p_attn.mean(axis=1)


def make_layer_params(key, d_model, nhead, dim_ff):
    ks = jax.random.split(key, 8)
    s = 0.05
    return {
        "ipw": s * jax.random.normal(ks[0], (3 * d_model, d_model), jnp.float32),
        "ipb": s * jax.random.normal(ks[1], (3 * d_model,), jnp.float32),
        "opw": s * jax.random.normal(ks[2], (d_model, d_model), jnp.float32),
        "opb": s * jax.random.normal(ks[3], (d_model,), jnp.float32),
        "l1w": s * jax.random.normal(ks[4], (dim_ff, d_model), jnp.float32),
        "l1b": s * jax.random.normal(ks[5], (dim_ff,), jnp.float32),
        "l2w": s * jax.random.normal(ks[6], (d_model, dim_ff), jnp.float32),
        "l2b": s * jax.random.normal(ks[7], (d_model,), jnp.float32),
        "n1w": jnp.ones((d_model,), jnp.float32),
        "n1b": jnp.zeros((d_model,), jnp.float32),
        "n2w": jnp.ones((d_model,), jnp.float32),
        "n2b": jnp.zeros((d_model,), jnp.float32),
    }


# ----------------------------------------------------------------------------
# Main
# ----------------------------------------------------------------------------
if __name__ == "__main__":
    S, N, D = 8, 2, 32          # seq, batch, d_model
    NHEAD, DIM_FF, NUM_LAYERS = 4, 64, 2

    root = jax.random.PRNGKey(0)
    k_src, *k_layers = jax.random.split(root, NUM_LAYERS + 1)
    src = jax.random.normal(k_src, (S, N, D), jnp.float32)   # PyTorch layout (S, N, D)
    layer_params = [make_layer_params(k, D, NHEAD, DIM_FF) for k in k_layers]

    out, weights = transformer_encoder_pallas(src, layer_params, nhead=NHEAD)
    out = jax.block_until_ready(out)
    weights = [jax.block_until_ready(w) for w in weights]

    # sanity check against pure-JAX reference
    x_ref = jnp.transpose(src, (1, 0, 2))
    for lp in layer_params:
        x_ref, w_ref = encoder_layer_ref(x_ref, lp, NHEAD)
    out_ref = jnp.transpose(x_ref, (1, 0, 2))

    assert out.shape == (S, N, D)
    assert all(w.shape == (N, S, S) for w in weights)
    max_out_err = float(jnp.max(jnp.abs(out - out_ref)))
    max_attn_err = float(jnp.max(jnp.abs(weights[-1] - w_ref)))
    # tolerance leaves headroom for the approximate (EUP) softmax reciprocal
    assert jnp.allclose(out, out_ref, atol=2e-3, rtol=2e-3), max_out_err
    assert jnp.allclose(weights[-1], w_ref, atol=2e-3, rtol=2e-3), max_attn_err

    print("KERNEL_OK")
</pallas_src>

<mosaic_0001>
module attributes {stable_mosaic.version = 11 : i64} {
  func.func @fused_encoder_kernel(%arg0: i32, %arg1: memref<2x8x32xf32, #tpu.memory_space<vmem>>, %arg2: memref<1x8x32x8xf32, #tpu.memory_space<vmem>>, %arg3: memref<1x8x1x8xf32, #tpu.memory_space<vmem>>, %arg4: memref<1x8x32x8xf32, #tpu.memory_space<vmem>>, %arg5: memref<1x8x1x8xf32, #tpu.memory_space<vmem>>, %arg6: memref<1x8x32x8xf32, #tpu.memory_space<vmem>>, %arg7: memref<1x8x1x8xf32, #tpu.memory_space<vmem>>, %arg8: memref<1x8x8x32xf32, #tpu.memory_space<vmem>>, %arg9: memref<1x1x1x32xf32, #tpu.memory_space<vmem>>, %arg10: memref<1x2x32x64xf32, #tpu.memory_space<vmem>>, %arg11: memref<1x1x1x64xf32, #tpu.memory_space<vmem>>, %arg12: memref<1x2x64x32xf32, #tpu.memory_space<vmem>>, %arg13: memref<1x1x1x32xf32, #tpu.memory_space<vmem>>, %arg14: memref<1x1x1x32xf32, #tpu.memory_space<vmem>>, %arg15: memref<1x1x1x32xf32, #tpu.memory_space<vmem>>, %arg16: memref<1x1x1x32xf32, #tpu.memory_space<vmem>>, %arg17: memref<1x1x1x32xf32, #tpu.memory_space<vmem>>, %arg18: memref<2x8x32xf32, #tpu.memory_space<vmem>>, %arg19: memref<1x2x8x8xf32, #tpu.memory_space<vmem>>, %arg20: memref<2x8x32xf32, #tpu.memory_space<vmem>>) attributes {dimension_semantics = [#tpu.dimension_semantics<arbitrary>], iteration_bounds = array<i64: 2>, scalar_prefetch = 0 : i64, scratch_operands = 1 : i64, tpu.core_type = #tpu.core_type<tc>, window_params = [{pipeline_mode = #tpu.pipeline_mode<synchronous>, transform_indices = @transform_0, window_bounds = array<i64: 2, 8, 32>}, {transform_indices = @transform_1, window_bounds = array<i64: 1, 8, 32, 8>}, {transform_indices = @transform_2, window_bounds = array<i64: 1, 8, 1, 8>}, {transform_indices = @transform_3, window_bounds = array<i64: 1, 8, 32, 8>}, {transform_indices = @transform_4, window_bounds = array<i64: 1, 8, 1, 8>}, {transform_indices = @transform_5, window_bounds = array<i64: 1, 8, 32, 8>}, {transform_indices = @transform_6, window_bounds = array<i64: 1, 8, 1, 8>}, {transform_indices = @transform_7, window_bounds = array<i64: 1, 8, 8, 32>}, {transform_indices = @transform_8, window_bounds = array<i64: 1, 1, 1, 32>}, {transform_indices = @transform_9, window_bounds = array<i64: 1, 2, 32, 64>}, {transform_indices = @transform_10, window_bounds = array<i64: 1, 1, 1, 64>}, {transform_indices = @transform_11, window_bounds = array<i64: 1, 2, 64, 32>}, {transform_indices = @transform_12, window_bounds = array<i64: 1, 1, 1, 32>}, {transform_indices = @transform_13, window_bounds = array<i64: 1, 1, 1, 32>}, {transform_indices = @transform_14, window_bounds = array<i64: 1, 1, 1, 32>}, {transform_indices = @transform_15, window_bounds = array<i64: 1, 1, 1, 32>}, {transform_indices = @transform_16, window_bounds = array<i64: 1, 1, 1, 32>}, {pipeline_mode = #tpu.pipeline_mode<synchronous>, transform_indices = @transform_17, window_bounds = array<i64: 2, 8, 32>}, {transform_indices = @transform_18, window_bounds = array<i64: 1, 2, 8, 8>}]} {
    %c0_i32 = arith.constant 0 : i32
    %0 = arith.cmpi eq, %arg0, %c0_i32 : i32
    %1 = arith.extui %0 : i1 to i32
    %c0_i32_0 = arith.constant 0 : i32
    %2 = arith.cmpi ne, %1, %c0_i32_0 : i32
    scf.if %2 {
      %c0_96 = arith.constant 0 : index
      %c0_97 = arith.constant 0 : index
      %c0_98 = arith.constant 0 : index
      %134 = vector.load %arg1[%c0_96, %c0_97, %c0_98] : memref<2x8x32xf32, #tpu.memory_space<vmem>>, vector<2x8x32xf32>
      %c0_99 = arith.constant 0 : index
      %c0_100 = arith.constant 0 : index
      %c0_101 = arith.constant 0 : index
      %135 = vector.load %arg20[%c0_99, %c0_100, %c0_101] : memref<2x8x32xf32, #tpu.memory_space<vmem>>, vector<2x8x32xf32>
      tpu.vector_store %arg20[%c0_99, %c0_100, %c0_101], %134 {strides = array<i32>} : memref<2x8x32xf32, #tpu.memory_space<vmem>>, vector<2x8x32xf32>,
    } else {
    }
    %c0 = arith.constant 0 : index
    %c0_1 = arith.constant 0 : index
    %c0_2 = arith.constant 0 : index
    %3 = vector.load %arg20[%c0, %c0_1, %c0_2] : memref<2x8x32xf32, #tpu.memory_space<vmem>>, vector<2x8x32xf32>
    %4 = tpu.concatenate %3, %3, %3, %3 in 0 : vector<2x8x32xf32>, vector<2x8x32xf32>, vector<2x8x32xf32>, vector<2x8x32xf32> -> vector<8x8x32xf32>
    %c0_3 = arith.constant 0 : index
    %c0_4 = arith.constant 0 : index
    %c0_5 = arith.constant 0 : index
    %c0_6 = arith.constant 0 : index
    %5 = vector.load %arg2[%c0_3, %c0_4, %c0_5, %c0_6] : memref<1x8x32x8xf32, #tpu.memory_space<vmem>>, vector<1x8x32x8xf32>
    %6 = vector.shape_cast %5 : vector<1x8x32x8xf32> to vector<8x32x8xf32>
    "tpu.trace_start"() <{level = 10 : i32, message = "bsd,bde->bse"}> : () -> ()
    %cst = arith.constant dense<0.000000e+00> : vector<8x8x8xf32>
    %7 = tpu.matmul %4, %6, %cst {dimension_numbers = #tpu.dot_dimension_numbers<[2], [1], [1], [2], [0, 0, 0, 1, 1, 2], [0], [0]>} : vector<8x8x32xf32>, vector<8x32x8xf32>, vector<8x8x8xf32> -> vector<8x8x8xf32>
    "tpu.trace_stop"() : () -> ()
    %c0_7 = arith.constant 0 : index
    %c0_8 = arith.constant 0 : index
    %c0_9 = arith.constant 0 : index
    %c0_10 = arith.constant 0 : index
    %8 = vector.load %arg3[%c0_7, %c0_8, %c0_9, %c0_10] : memref<1x8x1x8xf32, #tpu.memory_space<vmem>>, vector<1x8x1x8xf32>
    %9 = vector.shape_cast %8 : vector<1x8x1x8xf32> to vector<8x1x8xf32>
    %10 = vector.broadcast %9 : vector<8x1x8xf32> to vector<8x8x8xf32>
    %11 = arith.addf %7, %10 : vector<8x8x8xf32>
    %c0_11 = arith.constant 0 : index
    %c0_12 = arith.constant 0 : index
    %c0_13 = arith.constant 0 : index
    %c0_14 = arith.constant 0 : index
    %12 = vector.load %arg4[%c0_11, %c0_12, %c0_13, %c0_14] : memref<1x8x32x8xf32, #tpu.memory_space<vmem>>, vector<1x8x32x8xf32>
    %13 = vector.shape_cast %12 : vector<1x8x32x8xf32> to vector<8x32x8xf32>
    "tpu.trace_start"() <{level = 10 : i32, message = "bsd,bde->bse"}> : () -> ()
    %cst_15 = arith.constant dense<0.000000e+00> : vector<8x8x8xf32>
    %14 = tpu.matmul %4, %13, %cst_15 {dimension_numbers = #tpu.dot_dimension_numbers<[2], [1], [1], [2], [0, 0, 0, 1, 1, 2], [0], [0]>} : vector<8x8x32xf32>, vector<8x32x8xf32>, vector<8x8x8xf32> -> vector<8x8x8xf32>
    "tpu.trace_stop"() : () -> ()
    %c0_16 = arith.constant 0 : index
    %c0_17 = arith.constant 0 : index
    %c0_18 = arith.constant 0 : index
    %c0_19 = arith.constant 0 : index
    %15 = vector.load %arg5[%c0_16, %c0_17, %c0_18, %c0_19] : memref<1x8x1x8xf32, #tpu.memory_space<vmem>>, vector<1x8x1x8xf32>
    %16 = vector.shape_cast %15 : vector<1x8x1x8xf32> to vector<8x1x8xf32>
    %17 = vector.broadcast %16 : vector<8x1x8xf32> to vector<8x8x8xf32>
    %18 = arith.addf %14, %17 : vector<8x8x8xf32>
    %c0_20 = arith.constant 0 : index
    %c0_21 = arith.constant 0 : index
    %c0_22 = arith.constant 0 : index
    %c0_23 = arith.constant 0 : index
    %19 = vector.load %arg6[%c0_20, %c0_21, %c0_22, %c0_23] : memref<1x8x32x8xf32, #tpu.memory_space<vmem>>, vector<1x8x32x8xf32>
    %20 = vector.shape_cast %19 : vector<1x8x32x8xf32> to vector<8x32x8xf32>
    "tpu.trace_start"() <{level = 10 : i32, message = "bsd,bde->bse"}> : () -> ()
    %cst_24 = arith.constant dense<0.000000e+00> : vector<8x8x8xf32>
    %21 = tpu.matmul %4, %20, %cst_24 {dimension_numbers = #tpu.dot_dimension_numbers<[2], [1], [1], [2], [0, 0, 0, 1, 1, 2], [0], [0]>} : vector<8x8x32xf32>, vector<8x32x8xf32>, vector<8x8x8xf32> -> vector<8x8x8xf32>
    "tpu.trace_stop"() : () -> ()
    %c0_25 = arith.constant 0 : index
    %c0_26 = arith.constant 0 : index
    %c0_27 = arith.constant 0 : index
    %c0_28 = arith.constant 0 : index
    %22 = vector.load %arg7[%c0_25, %c0_26, %c0_27, %c0_28] : memref<1x8x1x8xf32, #tpu.memory_space<vmem>>, vector<1x8x1x8xf32>
    %23 = vector.shape_cast %22 : vector<1x8x1x8xf32> to vector<8x1x8xf32>
    %24 = vector.broadcast %23 : vector<8x1x8xf32> to vector<8x8x8xf32>
    %25 = arith.addf %21, %24 : vector<8x8x8xf32>
    "tpu.trace_start"() <{level = 10 : i32, message = "bqd,bkd->bqk"}> : () -> ()
    %cst_29 = arith.constant dense<0.000000e+00> : vector<8x8x8xf32>
    %26 = tpu.matmul %11, %18, %cst_29 {dimension_numbers = #tpu.dot_dimension_numbers<[2], [2], [1], [1], [0, 0, 0, 1, 1, 1], [0], [0]>} : vector<8x8x8xf32>, vector<8x8x8xf32>, vector<8x8x8xf32> -> vector<8x8x8xf32>
    "tpu.trace_stop"() : () -> ()
    %cst_30 = arith.constant dense<0xFF800000> : vector<8x8xf32>
    %27 = vector.multi_reduction <maximumf>, %26, %cst_30 [2] : vector<8x8x8xf32> to vector<8x8xf32>
    %28 = vector.shape_cast %27 : vector<8x8xf32> to vector<8x8x1xf32>
    %29 = vector.broadcast %28 : vector<8x8x1xf32> to vector<8x8x8xf32>
    %30 = arith.subf %26, %29 : vector<8x8x8xf32>
    %31 = math.exp %30 : vector<8x8x8xf32>
    %cst_31 = arith.constant dense<0.000000e+00> : vector<8x8xf32>
    %32 = vector.multi_reduction <add>, %31, %cst_31 [2] : vector<8x8x8xf32> to vector<8x8xf32>
    %33 = vector.shape_cast %32 : vector<8x8xf32> to vector<8x8x1xf32>
    %34 = tpu.reciprocal %33 {approx = true} : vector<8x8x1xf32> -> vector<8x8x1xf32>
    %35 = vector.broadcast %34 : vector<8x8x1xf32> to vector<8x8x8xf32>
    %36 = arith.mulf %31, %35 : vector<8x8x8xf32>
    %37 = vector.extract_strided_slice %36 {offsets = [0, 0, 0], sizes = [2, 8, 8], strides = [1, 1, 1]} : vector<8x8x8xf32> to vector<2x8x8xf32>
    %38 = vector.extract_strided_slice %36 {offsets = [2, 0, 0], sizes = [2, 8, 8], strides = [1, 1, 1]} : vector<8x8x8xf32> to vector<2x8x8xf32>
    %39 = arith.addf %37, %38 : vector<2x8x8xf32>
    %40 = vector.extract_strided_slice %36 {offsets = [4, 0, 0], sizes = [2, 8, 8], strides = [1, 1, 1]} : vector<8x8x8xf32> to vector<2x8x8xf32>
    %41 = arith.addf %39, %40 : vector<2x8x8xf32>
    %42 = vector.extract_strided_slice %36 {offsets = [6, 0, 0], sizes = [2, 8, 8], strides = [1, 1, 1]} : vector<8x8x8xf32> to vector<2x8x8xf32>
    %43 = arith.addf %41, %42 : vector<2x8x8xf32>
    %cst_32 = arith.constant 2.500000e-01 : f32
    %44 = vector.broadcast %cst_32 : f32 to vector<2x8x8xf32>
    %45 = arith.mulf %43, %44 : vector<2x8x8xf32>
    %c0_33 = arith.constant 0 : index
    %c0_34 = arith.constant 0 : index
    %c0_35 = arith.constant 0 : index
    %c0_36 = arith.constant 0 : index
    %46 = vector.load %arg19[%c0_33, %c0_34, %c0_35, %c0_36] : memref<1x2x8x8xf32, #tpu.memory_space<vmem>>, vector<1x2x8x8xf32>
    %47 = vector.shape_cast %46 : vector<1x2x8x8xf32> to vector<2x8x8xf32>
    %48 = vector.shape_cast %45 : vector<2x8x8xf32> to vector<1x2x8x8xf32>
    tpu.vector_store %arg19[%c0_33, %c0_34, %c0_35, %c0_36], %48 {strides = array<i32>} : memref<1x2x8x8xf32, #tpu.memory_space<vmem>>, vector<1x2x8x8xf32>,
    "tpu.trace_start"() <{level = 10 : i32, message = "bqk,bkd->bqd"}> : () -> ()
    %cst_37 = arith.constant dense<0.000000e+00> : vector<8x8x8xf32>
    %49 = tpu.matmul %36, %25, %cst_37 {dimension_numbers = #tpu.dot_dimension_numbers<[2], [1], [1], [2], [0, 0, 0, 1, 1, 2], [0], [0]>} : vector<8x8x8xf32>, vector<8x8x8xf32>, vector<8x8x8xf32> -> vector<8x8x8xf32>
    "tpu.trace_stop"() : () -> ()
    %c0_38 = arith.constant 0 : index
    %c0_39 = arith.constant 0 : index
    %c0_40 = arith.constant 0 : index
    %c0_41 = arith.constant 0 : index
    %50 = vector.load %arg8[%c0_38, %c0_39, %c0_40, %c0_41] : memref<1x8x8x32xf32, #tpu.memory_space<vmem>>, vector<1x8x8x32xf32>
    %51 = vector.shape_cast %50 : vector<1x8x8x32xf32> to vector<8x8x32xf32>
    "tpu.trace_start"() <{level = 10 : i32, message = "bsd,bde->bse"}> : () -> ()
    %cst_42 = arith.constant dense<0.000000e+00> : vector<8x8x32xf32>
    %52 = tpu.matmul %49, %51, %cst_42 {dimension_numbers = #tpu.dot_dimension_numbers<[2], [1], [1], [2], [0, 0, 0, 1, 1, 2], [0], [0]>} : vector<8x8x8xf32>, vector<8x8x32xf32>, vector<8x8x32xf32> -> vector<8x8x32xf32>
    "tpu.trace_stop"() : () -> ()
    %53 = vector.extract_strided_slice %52 {offsets = [0, 0, 0], sizes = [2, 8, 32], strides = [1, 1, 1]} : vector<8x8x32xf32> to vector<2x8x32xf32>
    %54 = vector.extract_strided_slice %52 {offsets = [2, 0, 0], sizes = [2, 8, 32], strides = [1, 1, 1]} : vector<8x8x32xf32> to vector<2x8x32xf32>
    %55 = arith.addf %53, %54 : vector<2x8x32xf32>
    %56 = vector.extract_strided_slice %52 {offsets = [4, 0, 0], sizes = [2, 8, 32], strides = [1, 1, 1]} : vector<8x8x32xf32> to vector<2x8x32xf32>
    %57 = arith.addf %55, %56 : vector<2x8x32xf32>
    %58 = vector.extract_strided_slice %52 {offsets = [6, 0, 0], sizes = [2, 8, 32], strides = [1, 1, 1]} : vector<8x8x32xf32> to vector<2x8x32xf32>
    %59 = arith.addf %57, %58 : vector<2x8x32xf32>
    %c0_43 = arith.constant 0 : index
    %c0_44 = arith.constant 0 : index
    %c0_45 = arith.constant 0 : index
    %c0_46 = arith.constant 0 : index
    %60 = vector.load %arg9[%c0_43, %c0_44, %c0_45, %c0_46] : memref<1x1x1x32xf32, #tpu.memory_space<vmem>>, vector<1x1x1x32xf32>
    %61 = vector.shape_cast %60 : vector<1x1x1x32xf32> to vector<1x1x32xf32>
    %62 = vector.broadcast %61 : vector<1x1x32xf32> to vector<2x8x32xf32>
    %63 = arith.addf %59, %62 : vector<2x8x32xf32>
    %64 = arith.addf %3, %63 : vector<2x8x32xf32>
    %c0_47 = arith.constant 0 : index
    %c0_48 = arith.constant 0 : index
    %c0_49 = arith.constant 0 : index
    %c0_50 = arith.constant 0 : index
    %65 = vector.load %arg14[%c0_47, %c0_48, %c0_49, %c0_50] : memref<1x1x1x32xf32, #tpu.memory_space<vmem>>, vector<1x1x1x32xf32>
    %66 = vector.shape_cast %65 : vector<1x1x1x32xf32> to vector<1x1x32xf32>
    %c0_51 = arith.constant 0 : index
    %c0_52 = arith.constant 0 : index
    %c0_53 = arith.constant 0 : index
    %c0_54 = arith.constant 0 : index
    %67 = vector.load %arg15[%c0_51, %c0_52, %c0_53, %c0_54] : memref<1x1x1x32xf32, #tpu.memory_space<vmem>>, vector<1x1x1x32xf32>
    %68 = vector.shape_cast %67 : vector<1x1x1x32xf32> to vector<1x1x32xf32>
    %cst_55 = arith.constant dense<0.000000e+00> : vector<2x8xf32>
    %69 = vector.multi_reduction <add>, %64, %cst_55 [2] : vector<2x8x32xf32> to vector<2x8xf32>
    %70 = vector.shape_cast %69 : vector<2x8xf32> to vector<2x8x1xf32>
    %cst_56 = arith.constant 3.200000e+01 : f32
    %71 = vector.broadcast %cst_56 : f32 to vector<2x8x1xf32>
    %72 = arith.divf %70, %71 : vector<2x8x1xf32>
    %73 = vector.broadcast %72 : vector<2x8x1xf32> to vector<2x8x32xf32>
    %74 = arith.subf %64, %73 : vector<2x8x32xf32>
    %75 = arith.mulf %74, %74 : vector<2x8x32xf32>
    %cst_57 = arith.constant dense<0.000000e+00> : vector<2x8xf32>
    %76 = vector.multi_reduction <add>, %75, %cst_57 [2] : vector<2x8x32xf32> to vector<2x8xf32>
    %77 = vector.shape_cast %76 : vector<2x8xf32> to vector<2x8x1xf32>
    %cst_58 = arith.constant 3.200000e+01 : f32
    %78 = vector.broadcast %cst_58 : f32 to vector<2x8x1xf32>
    %79 = arith.divf %77, %78 : vector<2x8x1xf32>
    %cst_59 = arith.constant 9.99999974E-6 : f32
    %80 = vector.broadcast %cst_59 : f32 to vector<2x8x1xf32>
    %81 = arith.addf %79, %80 : vector<2x8x1xf32>
    %82 = math.rsqrt %81 : vector<2x8x1xf32>
    %83 = vector.broadcast %82 : vector<2x8x1xf32> to vector<2x8x32xf32>
    %84 = arith.mulf %74, %83 : vector<2x8x32xf32>
    %85 = vector.broadcast %66 : vector<1x1x32xf32> to vector<2x8x32xf32>
    %86 = arith.mulf %84, %85 : vector<2x8x32xf32>
    %87 = vector.broadcast %68 : vector<1x1x32xf32> to vector<2x8x32xf32>
    %88 = arith.addf %86, %87 : vector<2x8x32xf32>
    %c0_60 = arith.constant 0 : index
    %c0_61 = arith.constant 0 : index
    %c0_62 = arith.constant 0 : index
    %c0_63 = arith.constant 0 : index
    %89 = vector.load %arg10[%c0_60, %c0_61, %c0_62, %c0_63] : memref<1x2x32x64xf32, #tpu.memory_space<vmem>>, vector<1x2x32x64xf32>
    %90 = vector.shape_cast %89 : vector<1x2x32x64xf32> to vector<2x32x64xf32>
    "tpu.trace_start"() <{level = 10 : i32, message = "nsd,ndf->nsf"}> : () -> ()
    %cst_64 = arith.constant dense<0.000000e+00> : vector<2x8x64xf32>
    %91 = tpu.matmul %88, %90, %cst_64 {dimension_numbers = #tpu.dot_dimension_numbers<[2], [1], [1], [2], [0, 0, 0, 1, 1, 2], [0], [0]>} : vector<2x8x32xf32>, vector<2x32x64xf32>, vector<2x8x64xf32> -> vector<2x8x64xf32>
    "tpu.trace_stop"() : () -> ()
    %c0_65 = arith.constant 0 : index
    %c0_66 = arith.constant 0 : index
    %c0_67 = arith.constant 0 : index
    %c0_68 = arith.constant 0 : index
    %92 = vector.load %arg11[%c0_65, %c0_66, %c0_67, %c0_68] : memref<1x1x1x64xf32, #tpu.memory_space<vmem>>, vector<1x1x1x64xf32>
    %93 = vector.shape_cast %92 : vector<1x1x1x64xf32> to vector<1x1x64xf32>
    %94 = vector.broadcast %93 : vector<1x1x64xf32> to vector<2x8x64xf32>
    %95 = arith.addf %91, %94 : vector<2x8x64xf32>
    %cst_69 = arith.constant 0.000000e+00 : f32
    %96 = vector.broadcast %cst_69 : f32 to vector<2x8x64xf32>
    %97 = arith.maximumf %95, %96 : vector<2x8x64xf32>
    %c0_70 = arith.constant 0 : index
    %c0_71 = arith.constant 0 : index
    %c0_72 = arith.constant 0 : index
    %c0_73 = arith.constant 0 : index
    %98 = vector.load %arg12[%c0_70, %c0_71, %c0_72, %c0_73] : memref<1x2x64x32xf32, #tpu.memory_space<vmem>>, vector<1x2x64x32xf32>
    %99 = vector.shape_cast %98 : vector<1x2x64x32xf32> to vector<2x64x32xf32>
    "tpu.trace_start"() <{level = 10 : i32, message = "nsf,nfd->nsd"}> : () -> ()
    %cst_74 = arith.constant dense<0.000000e+00> : vector<2x8x32xf32>
    %100 = tpu.matmul %97, %99, %cst_74 {dimension_numbers = #tpu.dot_dimension_numbers<[2], [1], [1], [2], [0, 0, 0, 1, 1, 2], [0], [0]>} : vector<2x8x64xf32>, vector<2x64x32xf32>, vector<2x8x32xf32> -> vector<2x8x32xf32>
    "tpu.trace_stop"() : () -> ()
    %c0_75 = arith.constant 0 : index
    %c0_76 = arith.constant 0 : index
    %c0_77 = arith.constant 0 : index
    %c0_78 = arith.constant 0 : index
    %101 = vector.load %arg13[%c0_75, %c0_76, %c0_77, %c0_78] : memref<1x1x1x32xf32, #tpu.memory_space<vmem>>, vector<1x1x1x32xf32>
    %102 = vector.shape_cast %101 : vector<1x1x1x32xf32> to vector<1x1x32xf32>
    %103 = vector.broadcast %102 : vector<1x1x32xf32> to vector<2x8x32xf32>
    %104 = arith.addf %100, %103 : vector<2x8x32xf32>
    %105 = arith.addf %88, %104 : vector<2x8x32xf32>
    %c0_79 = arith.constant 0 : index
    %c0_80 = arith.constant 0 : index
    %c0_81 = arith.constant 0 : index
    %c0_82 = arith.constant 0 : index
    %106 = vector.load %arg16[%c0_79, %c0_80, %c0_81, %c0_82] : memref<1x1x1x32xf32, #tpu.memory_space<vmem>>, vector<1x1x1x32xf32>
    %107 = vector.shape_cast %106 : vector<1x1x1x32xf32> to vector<1x1x32xf32>
    %c0_83 = arith.constant 0 : index
    %c0_84 = arith.constant 0 : index
    %c0_85 = arith.constant 0 : index
    %c0_86 = arith.constant 0 : index
    %108 = vector.load %arg17[%c0_83, %c0_84, %c0_85, %c0_86] : memref<1x1x1x32xf32, #tpu.memory_space<vmem>>, vector<1x1x1x32xf32>
    %109 = vector.shape_cast %108 : vector<1x1x1x32xf32> to vector<1x1x32xf32>
    %cst_87 = arith.constant dense<0.000000e+00> : vector<2x8xf32>
    %110 = vector.multi_reduction <add>, %105, %cst_87 [2] : vector<2x8x32xf32> to vector<2x8xf32>
    %111 = vector.shape_cast %110 : vector<2x8xf32> to vector<2x8x1xf32>
    %cst_88 = arith.constant 3.200000e+01 : f32
    %112 = vector.broadcast %cst_88 : f32 to vector<2x8x1xf32>
    %113 = arith.divf %111, %112 : vector<2x8x1xf32>
    %114 = vector.broadcast %113 : vector<2x8x1xf32> to vector<2x8x32xf32>
    %115 = arith.subf %105, %114 : vector<2x8x32xf32>
    %116 = arith.mulf %115, %115 : vector<2x8x32xf32>
    %cst_89 = arith.constant dense<0.000000e+00> : vector<2x8xf32>
    %117 = vector.multi_reduction <add>, %116, %cst_89 [2] : vector<2x8x32xf32> to vector<2x8xf32>
    %118 = vector.shape_cast %117 : vector<2x8xf32> to vector<2x8x1xf32>
    %cst_90 = arith.constant 3.200000e+01 : f32
    %119 = vector.broadcast %cst_90 : f32 to vector<2x8x1xf32>
    %120 = arith.divf %118, %119 : vector<2x8x1xf32>
    %cst_91 = arith.constant 9.99999974E-6 : f32
    %121 = vector.broadcast %cst_91 : f32 to vector<2x8x1xf32>
    %122 = arith.addf %120, %121 : vector<2x8x1xf32>
    %123 = math.rsqrt %122 : vector<2x8x1xf32>
    %124 = vector.broadcast %123 : vector<2x8x1xf32> to vector<2x8x32xf32>
    %125 = arith.mulf %115, %124 : vector<2x8x32xf32>
    %126 = vector.broadcast %107 : vector<1x1x32xf32> to vector<2x8x32xf32>
    %127 = arith.mulf %125, %126 : vector<2x8x32xf32>
    %128 = vector.broadcast %109 : vector<1x1x32xf32> to vector<2x8x32xf32>
    %129 = arith.addf %127, %128 : vector<2x8x32xf32>
    %c0_92 = arith.constant 0 : index
    %c0_93 = arith.constant 0 : index
    %c0_94 = arith.constant 0 : index
    %130 = vector.load %arg20[%c0_92, %c0_93, %c0_94] : memref<2x8x32xf32, #tpu.memory_space<vmem>>, vector<2x8x32xf32>
    tpu.vector_store %arg20[%c0_92, %c0_93, %c0_94], %129 {strides = array<i32>} : memref<2x8x32xf32, #tpu.memory_space<vmem>>, vector<2x8x32xf32>,
    %c1_i32 = arith.constant 1 : i32
    %131 = arith.cmpi eq, %arg0, %c1_i32 : i32
    %132 = arith.extui %131 : i1 to i32
    %c0_i32_95 = arith.constant 0 : i32
    %133 = arith.cmpi ne, %132, %c0_i32_95 : i32
    scf.if %133 {
      %c0_96 = arith.constant 0 : index
      %c0_97 = arith.constant 0 : index
      %c0_98 = arith.constant 0 : index
      %134 = vector.load %arg18[%c0_96, %c0_97, %c0_98] : memref<2x8x32xf32, #tpu.memory_space<vmem>>, vector<2x8x32xf32>
      tpu.vector_store %arg18[%c0_96, %c0_97, %c0_98], %129 {strides = array<i32>} : memref<2x8x32xf32, #tpu.memory_space<vmem>>, vector<2x8x32xf32>,
    } else {
    }
    return
  }
  func.func @transform_0(%arg0: i32) -> (i32, i32, i32) {
    %c0_i32 = arith.constant 0 : i32
    %c0_i32_0 = arith.constant 0 : i32
    %c0_i32_1 = arith.constant 0 : i32
    %c0_i32_2 = arith.constant 0 : i32
    return %c0_i32, %c0_i32_0, %c0_i32_1 : i32, i32, i32
  }
  func.func @transform_1(%arg0: i32) -> (i32, i32, i32, i32) {
    %c0_i32 = arith.constant 0 : i32
    %c0_i32_0 = arith.constant 0 : i32
    %c0_i32_1 = arith.constant 0 : i32
    %c0_i32_2 = arith.constant 0 : i32
    return %arg0, %c0_i32, %c0_i32_0, %c0_i32_1 : i32, i32, i32, i32
  }
  func.func @transform_2(%arg0: i32) -> (i32, i32, i32, i32) {
    %c0_i32 = arith.constant 0 : i32
    %c0_i32_0 = arith.constant 0 : i32
    %c0_i32_1 = arith.constant 0 : i32
    %c0_i32_2 = arith.constant 0 : i32
    return %arg0, %c0_i32, %c0_i32_0, %c0_i32_1 : i32, i32, i32, i32
  }
  func.func @transform_3(%arg0: i32) -> (i32, i32, i32, i32) {
    %c0_i32 = arith.constant 0 : i32
    %c0_i32_0 = arith.constant 0 : i32
    %c0_i32_1 = arith.constant 0 : i32
    %c0_i32_2 = arith.constant 0 : i32
    return %arg0, %c0_i32, %c0_i32_0, %c0_i32_1 : i32, i32, i32, i32
  }
  func.func @transform_4(%arg0: i32) -> (i32, i32, i32, i32) {
    %c0_i32 = arith.constant 0 : i32
    %c0_i32_0 = arith.constant 0 : i32
    %c0_i32_1 = arith.constant 0 : i32
    %c0_i32_2 = arith.constant 0 : i32
    return %arg0, %c0_i32, %c0_i32_0, %c0_i32_1 : i32, i32, i32, i32
  }
  func.func @transform_5(%arg0: i32) -> (i32, i32, i32, i32) {
    %c0_i32 = arith.constant 0 : i32
    %c0_i32_0 = arith.constant 0 : i32
    %c0_i32_1 = arith.constant 0 : i32
    %c0_i32_2 = arith.constant 0 : i32
    return %arg0, %c0_i32, %c0_i32_0, %c0_i32_1 : i32, i32, i32, i32
  }
  func.func @transform_6(%arg0: i32) -> (i32, i32, i32, i32) {
    %c0_i32 = arith.constant 0 : i32
    %c0_i32_0 = arith.constant 0 : i32
    %c0_i32_1 = arith.constant 0 : i32
    %c0_i32_2 = arith.constant 0 : i32
    return %arg0, %c0_i32, %c0_i32_0, %c0_i32_1 : i32, i32, i32, i32
  }
  func.func @transform_7(%arg0: i32) -> (i32, i32, i32, i32) {
    %c0_i32 = arith.constant 0 : i32
    %c0_i32_0 = arith.constant 0 : i32
    %c0_i32_1 = arith.constant 0 : i32
    %c0_i32_2 = arith.constant 0 : i32
    return %arg0, %c0_i32, %c0_i32_0, %c0_i32_1 : i32, i32, i32, i32
  }
  func.func @transform_8(%arg0: i32) -> (i32, i32, i32, i32) {
    %c0_i32 = arith.constant 0 : i32
    %c0_i32_0 = arith.constant 0 : i32
    %c0_i32_1 = arith.constant 0 : i32
    %c0_i32_2 = arith.constant 0 : i32
    return %arg0, %c0_i32, %c0_i32_0, %c0_i32_1 : i32, i32, i32, i32
  }
  func.func @transform_9(%arg0: i32) -> (i32, i32, i32, i32) {
    %c0_i32 = arith.constant 0 : i32
    %c0_i32_0 = arith.constant 0 : i32
    %c0_i32_1 = arith.constant 0 : i32
    %c0_i32_2 = arith.constant 0 : i32
    return %arg0, %c0_i32, %c0_i32_0, %c0_i32_1 : i32, i32, i32, i32
  }
  func.func @transform_10(%arg0: i32) -> (i32, i32, i32, i32) {
    %c0_i32 = arith.constant 0 : i32
    %c0_i32_0 = arith.constant 0 : i32
    %c0_i32_1 = arith.constant 0 : i32
    %c0_i32_2 = arith.constant 0 : i32
    return %arg0, %c0_i32, %c0_i32_0, %c0_i32_1 : i32, i32, i32, i32
  }
  func.func @transform_11(%arg0: i32) -> (i32, i32, i32, i32) {
    %c0_i32 = arith.constant 0 : i32
    %c0_i32_0 = arith.constant 0 : i32
    %c0_i32_1 = arith.constant 0 : i32
    %c0_i32_2 = arith.constant 0 : i32
    return %arg0, %c0_i32, %c0_i32_0, %c0_i32_1 : i32, i32, i32, i32
  }
  func.func @transform_12(%arg0: i32) -> (i32, i32, i32, i32) {
    %c0_i32 = arith.constant 0 : i32
    %c0_i32_0 = arith.constant 0 : i32
    %c0_i32_1 = arith.constant 0 : i32
    %c0_i32_2 = arith.constant 0 : i32
    return %arg0, %c0_i32, %c0_i32_0, %c0_i32_1 : i32, i32, i32, i32
  }
  func.func @transform_13(%arg0: i32) -> (i32, i32, i32, i32) {
    %c0_i32 = arith.constant 0 : i32
    %c0_i32_0 = arith.constant 0 : i32
    %c0_i32_1 = arith.constant 0 : i32
    %c0_i32_2 = arith.constant 0 : i32
    return %arg0, %c0_i32, %c0_i32_0, %c0_i32_1 : i32, i32, i32, i32
  }
  func.func @transform_14(%arg0: i32) -> (i32, i32, i32, i32) {
    %c0_i32 = arith.constant 0 : i32
    %c0_i32_0 = arith.constant 0 : i32
    %c0_i32_1 = arith.constant 0 : i32
    %c0_i32_2 = arith.constant 0 : i32
    return %arg0, %c0_i32, %c0_i32_0, %c0_i32_1 : i32, i32, i32, i32
  }
  func.func @transform_15(%arg0: i32) -> (i32, i32, i32, i32) {
    %c0_i32 = arith.constant 0 : i32
    %c0_i32_0 = arith.constant 0 : i32
    %c0_i32_1 = arith.constant 0 : i32
    %c0_i32_2 = arith.constant 0 : i32
    return %arg0, %c0_i32, %c0_i32_0, %c0_i32_1 : i32, i32, i32, i32
  }
  func.func @transform_16(%arg0: i32) -> (i32, i32, i32, i32) {
    %c0_i32 = arith.constant 0 : i32
    %c0_i32_0 = arith.constant 0 : i32
    %c0_i32_1 = arith.constant 0 : i32
    %c0_i32_2 = arith.constant 0 : i32
    return %arg0, %c0_i32, %c0_i32_0, %c0_i32_1 : i32, i32, i32, i32
  }
  func.func @transform_17(%arg0: i32) -> (i32, i32, i32) {
    %c0_i32 = arith.constant 0 : i32
    %c0_i32_0 = arith.constant 0 : i32
    %c0_i32_1 = arith.constant 0 : i32
    %c0_i32_2 = arith.constant 0 : i32
    return %c0_i32, %c0_i32_0, %c0_i32_1 : i32, i32, i32
  }
  func.func @transform_18(%arg0: i32) -> (i32, i32, i32, i32) {
    %c0_i32 = arith.constant 0 : i32
    %c0_i32_0 = arith.constant 0 : i32
    %c0_i32_1 = arith.constant 0 : i32
    %c0_i32_2 = arith.constant 0 : i32
    return %arg0, %c0_i32, %c0_i32_0, %c0_i32_1 : i32, i32, i32, i32
  }
}

</mosaic_0001>

<llo_original>
// kernel: transformer_encoder_pallas.1
$region0: #{transformer_encoder_pallas.1}
  #allocation0 [shape = 'u32[]', space=smem, size = 0x4, offset = 0x4, fixed_abs, tag = 'smem constant byte address 0x4 - core index']
  #allocation1 [shape = 'u32[72,128]{1,0:T(1,128)}', space=vmem, size = 0x9000, scoped, tag = 'internal scratch']
  #allocation2 [shape = 'f32[2,8,32]{2,1,0:T(8,128)}', space=vmem, size = 0x2000, scoped, tag = 'scratch operand']
  %s0 = inlined_call_operand.vmem [shape: f32[2,8,32], index: 0, kind: input, shape index: {}, may-alias: {0,17}]
  %s1 = inlined_call_operand.vmem [shape: f32[2,8,32,8], index: 1, kind: input, shape index: {}]
  %s2 = inlined_call_operand.vmem [shape: f32[2,8,1,8], index: 2, kind: input, shape index: {}]
  %s3 = inlined_call_operand.vmem [shape: f32[2,8,32,8], index: 3, kind: input, shape index: {}]
  %s4 = inlined_call_operand.vmem [shape: f32[2,8,1,8], index: 4, kind: input, shape index: {}]
  %s5 = inlined_call_operand.vmem [shape: f32[2,8,32,8], index: 5, kind: input, shape index: {}]
  %s6 = inlined_call_operand.vmem [shape: f32[2,8,1,8], index: 6, kind: input, shape index: {}]
  %s7 = inlined_call_operand.vmem [shape: f32[2,8,8,32], index: 7, kind: input, shape index: {}]
  %s8 = inlined_call_operand.vmem [shape: f32[2,1,1,32], index: 8, kind: input, shape index: {}]
  %s9 = inlined_call_operand.vmem [shape: f32[2,2,32,64], index: 9, kind: input, shape index: {}]
  %s10 = inlined_call_operand.vmem [shape: f32[2,1,1,64], index: 10, kind: input, shape index: {}]
  %s11 = inlined_call_operand.vmem [shape: f32[2,2,64,32], index: 11, kind: input, shape index: {}]
  %s12 = inlined_call_operand.vmem [shape: f32[2,1,1,32], index: 12, kind: input, shape index: {}]
  %s13 = inlined_call_operand.vmem [shape: f32[2,1,1,32], index: 13, kind: input, shape index: {}]
  %s14 = inlined_call_operand.vmem [shape: f32[2,1,1,32], index: 14, kind: input, shape index: {}]
  %s15 = inlined_call_operand.vmem [shape: f32[2,1,1,32], index: 15, kind: input, shape index: {}]
  %s16 = inlined_call_operand.vmem [shape: f32[2,1,1,32], index: 16, kind: input, shape index: {}]
  %s17 = inlined_call_operand.vmem [shape: f32[2,8,32], index: 17, kind: output, shape index: {0}, may-alias: {0,17}]
  %s18 = inlined_call_operand.vmem [shape: f32[2,2,8,8], index: 18, kind: output, shape index: {1}]
  %19 = xla_tuple %s17, %s18
  %s20 = sld [smem:[#allocation0]]
  $region117: #{transformer_encoder_pallas.1} parent=0
    _
  %s22 = ssub.s32 1, %s20
  %s23 = scalar_select 0, %s22, %s20
  loop: start=0, step=1, limit=4
  $region2: #{transformer_encoder_pallas.1} parent=0 // loop_pre_header
    _
  $region3: #{transformer_encoder_pallas.1} parent=0 // loop_header
    %s25 = sphi 0, %s29
    %p26 = scmp.ge.s32.totalorder %s25, 4
    %s33 = sphi 0, %s33
    %s35 = sphi 0, %s33
    %s36 = sphi 0, %s35
    %s50 = sphi 0, %s36
    %s56 = sphi 0, %s58
    %s59 = sphi 0, %s56
    %s60 = sphi 0, %s59
    %s76 = sphi 0, %s60
    %s82 = sphi 0, %s84
    %s85 = sphi 0, %s82
    %s86 = sphi 0, %s85
    %s102 = sphi 0, %s86
    %s108 = sphi 0, %s110
    %s111 = sphi 0, %s108
    %s112 = sphi 0, %s111
    %s128 = sphi 0, %s112
    %s134 = sphi 0, %s136
    %s137 = sphi 0, %s134
    %s138 = sphi 0, %s137
    %s154 = sphi 0, %s138
    %s160 = sphi 0, %s162
    %s163 = sphi 0, %s160
    %s164 = sphi 0, %s163
    %s180 = sphi 0, %s164
    %s186 = sphi 0, %s188
    %s189 = sphi 0, %s186
    %s190 = sphi 0, %s189
    %s206 = sphi 0, %s190
    %s212 = sphi 0, %s214
    %s215 = sphi 0, %s212
    %s216 = sphi 0, %s215
    %s232 = sphi 0, %s216
    %s238 = sphi 0, %s240
    %s241 = sphi 0, %s238
    %s242 = sphi 0, %s241
    %s258 = sphi 0, %s242
    %s264 = sphi 0, %s266
    %s267 = sphi 0, %s264
    %s268 = sphi 0, %s267
    %s284 = sphi 0, %s268
    %s290 = sphi 0, %s292
    %s293 = sphi 0, %s290
    %s294 = sphi 0, %s293
    %s310 = sphi 0, %s294
    %s316 = sphi 0, %s318
    %s319 = sphi 0, %s316
    %s320 = sphi 0, %s319
    %s336 = sphi 0, %s320
    %s342 = sphi 0, %s344
    %s345 = sphi 0, %s342
    %s346 = sphi 0, %s345
    %s362 = sphi 0, %s346
    %s368 = sphi 0, %s370
    %s371 = sphi 0, %s368
    %s372 = sphi 0, %s371
    %s388 = sphi 0, %s372
    %s394 = sphi 0, %s396
    %s397 = sphi 0, %s394
    %s398 = sphi 0, %s397
    %s414 = sphi 0, %s398
    %s420 = sphi 0, %s422
    %s423 = sphi 0, %s420
    %s424 = sphi 0, %s423
    %s440 = sphi 0, %s424
    %s446 = sphi 0, %s448
    %s449 = sphi 0, %s446
    %s450 = sphi 0, %s449
    %s466 = sphi 0, %s450
    %s470 = sphi 0, %s470
    %s472 = sphi 0, %s470
    %s473 = sphi 0, %s472
    %s487 = sphi 0, %s473
    %s493 = sphi 0, %s495
    %s496 = sphi 0, %s493
    %s497 = sphi 0, %s496
    %s513 = sphi 0, %s497
  $region4: #{transformer_encoder_pallas.1} parent=0 // loop_header_branch
    %28 = sbr.rel (%p26) target = $region8
  $region5: #{transformer_encoder_pallas.1} parent=0 // loop_body
    %s30 = ssub.s32 %s25, 1
    %s31 = ssub.s32 %s25, 2
    %s32 = sadd.s32 %s25, 1
    %s34 = sadd.s32 %s33, 1
    %p37 = scmp.eq.s32.totalorder %s25, 1
    %p38 = scmp.ne.s32.totalorder %s33, %s35
    %p39 = scmp.eq.s32.totalorder %s25, 0
    %p40 = por %p38, %p39
    %p41 = scmp.ne.s32.totalorder %s33, %s35
    %p42 = scmp.eq.s32.totalorder %s30, 1
    %p43 = por %p41, %p42
    %p44 = scmp.ne.s32.totalorder %s35, %s36
    %p45 = scmp.eq.s32.totalorder %s30, 0
    %p46 = por %p44, %p45
    %p47 = scmp.ne.s32.totalorder %s35, %s36
    %p48 = scmp.eq.s32.totalorder %s31, 1
    %p49 = por %p47, %p48
    %p51 = scmp.ne.s32.totalorder %s36, %s50
    %p52 = scmp.eq.s32.totalorder %s31, 0
    %p53 = por %p51, %p52
    %s54 = ssub.s32 %s25, %s32
    %p55 = scmp.eq.s32.totalorder %s54, 0
    %s57 = sadd.s32 %s56, 1
    %s58 = scalar_select %p55, %s56, %s57
    %p61 = pneg %p55
    %p62 = scmp.eq.s32.totalorder %s25, 1
    %p63 = por %p61, %p62
    %p64 = scmp.ne.s32.totalorder %s56, %s59
    %p65 = scmp.eq.s32.totalorder %s25, 0
    %p66 = por %p64, %p65
    %p67 = scmp.ne.s32.totalorder %s56, %s59
    %p68 = scmp.eq.s32.totalorder %s30, 1
    %p69 = por %p67, %p68
    %p70 = scmp.ne.s32.totalorder %s59, %s60
    %p71 = scmp.eq.s32.totalorder %s30, 0
    %p72 = por %p70, %p71
    %p73 = scmp.ne.s32.totalorder %s59, %s60
    %p74 = scmp.eq.s32.totalorder %s31, 1
    %p75 = por %p73, %p74
    %p77 = scmp.ne.s32.totalorder %s60, %s76
    %p78 = scmp.eq.s32.totalorder %s31, 0
    %p79 = por %p77, %p78
    %s80 = ssub.s32 %s25, %s32
    %p81 = scmp.eq.s32.totalorder %s80, 0
    %s83 = sadd.s32 %s82, 1
    %s84 = scalar_select %p81, %s82, %s83
    %p87 = pneg %p81
    %p88 = scmp.eq.s32.totalorder %s25, 1
    %p89 = por %p87, %p88
    %p90 = scmp.ne.s32.totalorder %s82, %s85
    %p91 = scmp.eq.s32.totalorder %s25, 0
    %p92 = por %p90, %p91
    %p93 = scmp.ne.s32.totalorder %s82, %s85
    %p94 = scmp.eq.s32.totalorder %s30, 1
    %p95 = por %p93, %p94
    %p96 = scmp.ne.s32.totalorder %s85, %s86
    %p97 = scmp.eq.s32.totalorder %s30, 0
    %p98 = por %p96, %p97
    %p99 = scmp.ne.s32.totalorder %s85, %s86
    %p100 = scmp.eq.s32.totalorder %s31, 1
    %p101 = por %p99, %p100
    %p103 = scmp.ne.s32.totalorder %s86, %s102
    %p104 = scmp.eq.s32.totalorder %s31, 0
    %p105 = por %p103, %p104
    %s106 = ssub.s32 %s25, %s32
    %p107 = scmp.eq.s32.totalorder %s106, 0
    %s109 = sadd.s32 %s108, 1
    %s110 = scalar_select %p107, %s108, %s109
    %p113 = pneg %p107
    %p114 = scmp.eq.s32.totalorder %s25, 1
    %p115 = por %p113, %p114
    %p116 = scmp.ne.s32.totalorder %s108, %s111
    %p117 = scmp.eq.s32.totalorder %s25, 0
    %p118 = por %p116, %p117
    %p119 = scmp.ne.s32.totalorder %s108, %s111
    %p120 = scmp.eq.s32.totalorder %s30, 1
    %p121 = por %p119, %p120
    %p122 = scmp.ne.s32.totalorder %s111, %s112
    %p123 = scmp.eq.s32.totalorder %s30, 0
    %p124 = por %p122, %p123
    %p125 = scmp.ne.s32.totalorder %s111, %s112
    %p126 = scmp.eq.s32.totalorder %s31, 1
    %p127 = por %p125, %p126
    %p129 = scmp.ne.s32.totalorder %s112, %s128
    %p130 = scmp.eq.s32.totalorder %s31, 0
    %p131 = por %p129, %p130
    %s132 = ssub.s32 %s25, %s32
    %p133 = scmp.eq.s32.totalorder %s132, 0
    %s135 = sadd.s32 %s134, 1
    %s136 = scalar_select %p133, %s134, %s135
    %p139 = pneg %p133
    %p140 = scmp.eq.s32.totalorder %s25, 1
    %p141 = por %p139, %p140
    %p142 = scmp.ne.s32.totalorder %s134, %s137
    %p143 = scmp.eq.s32.totalorder %s25, 0
    %p144 = por %p142, %p143
    %p145 = scmp.ne.s32.totalorder %s134, %s137
    %p146 = scmp.eq.s32.totalorder %s30, 1
    %p147 = por %p145, %p146
    %p148 = scmp.ne.s32.totalorder %s137, %s138
    %p149 = scmp.eq.s32.totalorder %s30, 0
    %p150 = por %p148, %p149
    %p151 = scmp.ne.s32.totalorder %s137, %s138
    %p152 = scmp.eq.s32.totalorder %s31, 1
    %p153 = por %p151, %p152
    %p155 = scmp.ne.s32.totalorder %s138, %s154
    %p156 = scmp.eq.s32.totalorder %s31, 0
    %p157 = por %p155, %p156
    %s158 = ssub.s32 %s25, %s32
    %p159 = scmp.eq.s32.totalorder %s158, 0
    %s161 = sadd.s32 %s160, 1
    %s162 = scalar_select %p159, %s160, %s161
    %p165 = pneg %p159
    %p166 = scmp.eq.s32.totalorder %s25, 1
    %p167 = por %p165, %p166
    %p168 = scmp.ne.s32.totalorder %s160, %s163
    %p169 = scmp.eq.s32.totalorder %s25, 0
    %p170 = por %p168, %p169
    %p171 = scmp.ne.s32.totalorder %s160, %s163
    %p172 = scmp.eq.s32.totalorder %s30, 1
    %p173 = por %p171, %p172
    %p174 = scmp.ne.s32.totalorder %s163, %s164
    %p175 = scmp.eq.s32.totalorder %s30, 0
    %p176 = por %p174, %p175
    %p177 = scmp.ne.s32.totalorder %s163, %s164
    %p178 = scmp.eq.s32.totalorder %s31, 1
    %p179 = por %p177, %p178
    %p181 = scmp.ne.s32.totalorder %s164, %s180
    %p182 = scmp.eq.s32.totalorder %s31, 0
    %p183 = por %p181, %p182
    %s184 = ssub.s32 %s25, %s32
    %p185 = scmp.eq.s32.totalorder %s184, 0
    %s187 = sadd.s32 %s186, 1
    %s188 = scalar_select %p185, %s186, %s187
    %p191 = pneg %p185
    %p192 = scmp.eq.s32.totalorder %s25, 1
    %p193 = por %p191, %p192
    %p194 = scmp.ne.s32.totalorder %s186, %s189
    %p195 = scmp.eq.s32.totalorder %s25, 0
    %p196 = por %p194, %p195
    %p197 = scmp.ne.s32.totalorder %s186, %s189
    %p198 = scmp.eq.s32.totalorder %s30, 1
    %p199 = por %p197, %p198
    %p200 = scmp.ne.s32.totalorder %s189, %s190
    %p201 = scmp.eq.s32.totalorder %s30, 0
    %p202 = por %p200, %p201
    %p203 = scmp.ne.s32.totalorder %s189, %s190
    %p204 = scmp.eq.s32.totalorder %s31, 1
    %p205 = por %p203, %p204
    %p207 = scmp.ne.s32.totalorder %s190, %s206
    %p208 = scmp.eq.s32.totalorder %s31, 0
    %p209 = por %p207, %p208
    %s210 = ssub.s32 %s25, %s32
    %p211 = scmp.eq.s32.totalorder %s210, 0
    %s213 = sadd.s32 %s212, 1
    %s214 = scalar_select %p211, %s212, %s213
    %p217 = pneg %p211
    %p218 = scmp.eq.s32.totalorder %s25, 1
    %p219 = por %p217, %p218
    %p220 = scmp.ne.s32.totalorder %s212, %s215
    %p221 = scmp.eq.s32.totalorder %s25, 0
    %p222 = por %p220, %p221
    %p223 = scmp.ne.s32.totalorder %s212, %s215
    %p224 = scmp.eq.s32.totalorder %s30, 1
    %p225 = por %p223, %p224
    %p226 = scmp.ne.s32.totalorder %s215, %s216
    %p227 = scmp.eq.s32.totalorder %s30, 0
    %p228 = por %p226, %p227
    %p229 = scmp.ne.s32.totalorder %s215, %s216
    %p230 = scmp.eq.s32.totalorder %s31, 1
    %p231 = por %p229, %p230
    %p233 = scmp.ne.s32.totalorder %s216, %s232
    %p234 = scmp.eq.s32.totalorder %s31, 0
    %p235 = por %p233, %p234
    %s236 = ssub.s32 %s25, %s32
    %p237 = scmp.eq.s32.totalorder %s236, 0
    %s239 = sadd.s32 %s238, 1
    %s240 = scalar_select %p237, %s238, %s239
    %p243 = pneg %p237
    %p244 = scmp.eq.s32.totalorder %s25, 1
    %p245 = por %p243, %p244
    %p246 = scmp.ne.s32.totalorder %s238, %s241
    %p247 = scmp.eq.s32.totalorder %s25, 0
    %p248 = por %p246, %p247
    %p249 = scmp.ne.s32.totalorder %s238, %s241
    %p250 = scmp.eq.s32.totalorder %s30, 1
    %p251 = por %p249, %p250
    %p252 = scmp.ne.s32.totalorder %s241, %s242
    %p253 = scmp.eq.s32.totalorder %s30, 0
    %p254 = por %p252, %p253
    %p255 = scmp.ne.s32.totalorder %s241, %s242
    %p256 = scmp.eq.s32.totalorder %s31, 1
    %p257 = por %p255, %p256
    %p259 = scmp.ne.s32.totalorder %s242, %s258
    %p260 = scmp.eq.s32.totalorder %s31, 0
    %p261 = por %p259, %p260
    %s262 = ssub.s32 %s25, %s32
    %p263 = scmp.eq.s32.totalorder %s262, 0
    %s265 = sadd.s32 %s264, 1
    %s266 = scalar_select %p263, %s264, %s265
    %p269 = pneg %p263
    %p270 = scmp.eq.s32.totalorder %s25, 1
    %p271 = por %p269, %p270
    %p272 = scmp.ne.s32.totalorder %s264, %s267
    %p273 = scmp.eq.s32.totalorder %s25, 0
    %p274 = por %p272, %p273
    %p275 = scmp.ne.s32.totalorder %s264, %s267
    %p276 = scmp.eq.s32.totalorder %s30, 1
    %p277 = por %p275, %p276
    %p278 = scmp.ne.s32.totalorder %s267, %s268
    %p279 = scmp.eq.s32.totalorder %s30, 0
    %p280 = por %p278, %p279
    %p281 = scmp.ne.s32.totalorder %s267, %s268
    %p282 = scmp.eq.s32.totalorder %s31, 1
    %p283 = por %p281, %p282
    %p285 = scmp.ne.s32.totalorder %s268, %s284
    %p286 = scmp.eq.s32.totalorder %s31, 0
    %p287 = por %p285, %p286
    %s288 = ssub.s32 %s25, %s32
    %p289 = scmp.eq.s32.totalorder %s288, 0
    %s291 = sadd.s32 %s290, 1
    %s292 = scalar_select %p289, %s290, %s291
    %p295 = pneg %p289
    %p296 = scmp.eq.s32.totalorder %s25, 1
    %p297 = por %p295, %p296
    %p298 = scmp.ne.s32.totalorder %s290, %s293
    %p299 = scmp.eq.s32.totalorder %s25, 0
    %p300 = por %p298, %p299
    %p301 = scmp.ne.s32.totalorder %s290, %s293
    %p302 = scmp.eq.s32.totalorder %s30, 1
    %p303 = por %p301, %p302
    %p304 = scmp.ne.s32.totalorder %s293, %s294
    %p305 = scmp.eq.s32.totalorder %s30, 0
    %p306 = por %p304, %p305
    %p307 = scmp.ne.s32.totalorder %s293, %s294
    %p308 = scmp.eq.s32.totalorder %s31, 1
    %p309 = por %p307, %p308
    %p311 = scmp.ne.s32.totalorder %s294, %s310
    %p312 = scmp.eq.s32.totalorder %s31, 0
    %p313 = por %p311, %p312
    %s314 = ssub.s32 %s25, %s32
    %p315 = scmp.eq.s32.totalorder %s314, 0
    %s317 = sadd.s32 %s316, 1
    %s318 = scalar_select %p315, %s316, %s317
    %p321 = pneg %p315
    %p322 = scmp.eq.s32.totalorder %s25, 1
    %p323 = por %p321, %p322
    %p324 = scmp.ne.s32.totalorder %s316, %s319
    %p325 = scmp.eq.s32.totalorder %s25, 0
    %p326 = por %p324, %p325
    %p327 = scmp.ne.s32.totalorder %s316, %s319
    %p328 = scmp.eq.s32.totalorder %s30, 1
    %p329 = por %p327, %p328
    %p330 = scmp.ne.s32.totalorder %s319, %s320
    %p331 = scmp.eq.s32.totalorder %s30, 0
    %p332 = por %p330, %p331
    %p333 = scmp.ne.s32.totalorder %s319, %s320
    %p334 = scmp.eq.s32.totalorder %s31, 1
    %p335 = por %p333, %p334
    %p337 = scmp.ne.s32.totalorder %s320, %s336
    %p338 = scmp.eq.s32.totalorder %s31, 0
    %p339 = por %p337, %p338
    %s340 = ssub.s32 %s25, %s32
    %p341 = scmp.eq.s32.totalorder %s340, 0
    %s343 = sadd.s32 %s342, 1
    %s344 = scalar_select %p341, %s342, %s343
    %p347 = pneg %p341
    %p348 = scmp.eq.s32.totalorder %s25, 1
    %p349 = por %p347, %p348
    %p350 = scmp.ne.s32.totalorder %s342, %s345
    %p351 = scmp.eq.s32.totalorder %s25, 0
    %p352 = por %p350, %p351
    %p353 = scmp.ne.s32.totalorder %s342, %s345
    %p354 = scmp.eq.s32.totalorder %s30, 1
    %p355 = por %p353, %p354
    %p356 = scmp.ne.s32.totalorder %s345, %s346
    %p357 = scmp.eq.s32.totalorder %s30, 0
    %p358 = por %p356, %p357
    %p359 = scmp.ne.s32.totalorder %s345, %s346
    %p360 = scmp.eq.s32.totalorder %s31, 1
    %p361 = por %p359, %p360
    %p363 = scmp.ne.s32.totalorder %s346, %s362
    %p364 = scmp.eq.s32.totalorder %s31, 0
    %p365 = por %p363, %p364
    %s366 = ssub.s32 %s25, %s32
    %p367 = scmp.eq.s32.totalorder %s366, 0
    %s369 = sadd.s32 %s368, 1
    %s370 = scalar_select %p367, %s368, %s369
    %p373 = pneg %p367
    %p374 = scmp.eq.s32.totalorder %s25, 1
    %p375 = por %p373, %p374
    %p376 = scmp.ne.s32.totalorder %s368, %s371
    %p377 = scmp.eq.s32.totalorder %s25, 0
    %p378 = por %p376, %p377
    %p379 = scmp.ne.s32.totalorder %s368, %s371
    %p380 = scmp.eq.s32.totalorder %s30, 1
    %p381 = por %p379, %p380
    %p382 = scmp.ne.s32.totalorder %s371, %s372
    %p383 = scmp.eq.s32.totalorder %s30, 0
    %p384 = por %p382, %p383
    %p385 = scmp.ne.s32.totalorder %s371, %s372
    %p386 = scmp.eq.s32.totalorder %s31, 1
    %p387 = por %p385, %p386
    %p389 = scmp.ne.s32.totalorder %s372, %s388
    %p390 = scmp.eq.s32.totalorder %s31, 0
    %p391 = por %p389, %p390
    %s392 = ssub.s32 %s25, %s32
    %p393 = scmp.eq.s32.totalorder %s392, 0
    %s395 = sadd.s32 %s394, 1
    %s396 = scalar_select %p393, %s394, %s395
    %p399 = pneg %p393
    %p400 = scmp.eq.s32.totalorder %s25, 1
    %p401 = por %p399, %p400
    %p402 = scmp.ne.s32.totalorder %s394, %s397
    %p403 = scmp.eq.s32.totalorder %s25, 0
    %p404 = por %p402, %p403
    %p405 = scmp.ne.s32.totalorder %s394, %s397
    %p406 = scmp.eq.s32.totalorder %s30, 1
    %p407 = por %p405, %p406
    %p408 = scmp.ne.s32.totalorder %s397, %s398
    %p409 = scmp.eq.s32.totalorder %s30, 0
    %p410 = por %p408, %p409
    %p411 = scmp.ne.s32.totalorder %s397, %s398
    %p412 = scmp.eq.s32.totalorder %s31, 1
    %p413 = por %p411, %p412
    %p415 = scmp.ne.s32.totalorder %s398, %s414
    %p416 = scmp.eq.s32.totalorder %s31, 0
    %p417 = por %p415, %p416
    %s418 = ssub.s32 %s25, %s32
    %p419 = scmp.eq.s32.totalorder %s418, 0
    %s421 = sadd.s32 %s420, 1
    %s422 = scalar_select %p419, %s420, %s421
    %p425 = pneg %p419
    %p426 = scmp.eq.s32.totalorder %s25, 1
    %p427 = por %p425, %p426
    %p428 = scmp.ne.s32.totalorder %s420, %s423
    %p429 = scmp.eq.s32.totalorder %s25, 0
    %p430 = por %p428, %p429
    %p431 = scmp.ne.s32.totalorder %s420, %s423
    %p432 = scmp.eq.s32.totalorder %s30, 1
    %p433 = por %p431, %p432
    %p434 = scmp.ne.s32.totalorder %s423, %s424
    %p435 = scmp.eq.s32.totalorder %s30, 0
    %p436 = por %p434, %p435
    %p437 = scmp.ne.s32.totalorder %s423, %s424
    %p438 = scmp.eq.s32.totalorder %s31, 1
    %p439 = por %p437, %p438
    %p441 = scmp.ne.s32.totalorder %s424, %s440
    %p442 = scmp.eq.s32.totalorder %s31, 0
    %p443 = por %p441, %p442
    %s444 = ssub.s32 %s25, %s32
    %p445 = scmp.eq.s32.totalorder %s444, 0
    %s447 = sadd.s32 %s446, 1
    %s448 = scalar_select %p445, %s446, %s447
    %p451 = pneg %p445
    %p452 = scmp.eq.s32.totalorder %s25, 1
    %p453 = por %p451, %p452
    %p454 = scmp.ne.s32.totalorder %s446, %s449
    %p455 = scmp.eq.s32.totalorder %s25, 0
    %p456 = por %p454, %p455
    %p457 = scmp.ne.s32.totalorder %s446, %s449
    %p458 = scmp.eq.s32.totalorder %s30, 1
    %p459 = por %p457, %p458
    %p460 = scmp.ne.s32.totalorder %s449, %s450
    %p461 = scmp.eq.s32.totalorder %s30, 0
    %p462 = por %p460, %p461
    %p463 = scmp.ne.s32.totalorder %s449, %s450
    %p464 = scmp.eq.s32.totalorder %s31, 1
    %p465 = por %p463, %p464
    %p467 = scmp.ne.s32.totalorder %s450, %s466
    %p468 = scmp.eq.s32.totalorder %s31, 0
    %p469 = por %p467, %p468
    %s471 = sadd.s32 %s470, 1
    %p474 = scmp.eq.s32.totalorder %s25, 1
    %p475 = scmp.ne.s32.totalorder %s470, %s472
    %p476 = scmp.eq.s32.totalorder %s25, 0
    %p477 = por %p475, %p476
    %p478 = scmp.ne.s32.totalorder %s470, %s472
    %p479 = scmp.eq.s32.totalorder %s30, 1
    %p480 = por %p478, %p479
    %p481 = scmp.ne.s32.totalorder %s472, %s473
    %p482 = scmp.eq.s32.totalorder %s30, 0
    %p483 = por %p481, %p482
    %p484 = scmp.ne.s32.totalorder %s472, %s473
    %p485 = scmp.eq.s32.totalorder %s31, 1
    %p486 = por %p484, %p485
    %p488 = scmp.ne.s32.totalorder %s473, %s487
    %p489 = scmp.eq.s32.totalorder %s31, 0
    %p490 = por %p488, %p489
    %s491 = ssub.s32 %s25, %s32
    %p492 = scmp.eq.s32.totalorder %s491, 0
    %s494 = sadd.s32 %s493, 1
    %s495 = scalar_select %p492, %s493, %s494
    %p498 = pneg %p492
    %p499 = scmp.eq.s32.totalorder %s25, 1
    %p500 = por %p498, %p499
    %p501 = scmp.ne.s32.totalorder %s493, %s496
    %p502 = scmp.eq.s32.totalorder %s25, 0
    %p503 = por %p501, %p502
    %p504 = scmp.ne.s32.totalorder %s493, %s496
    %p505 = scmp.eq.s32.totalorder %s30, 1
    %p506 = por %p504, %p505
    %p507 = scmp.ne.s32.totalorder %s496, %s497
    %p508 = scmp.eq.s32.totalorder %s30, 0
    %p509 = por %p507, %p508
    %p510 = scmp.ne.s32.totalorder %s496, %s497
    %p511 = scmp.eq.s32.totalorder %s31, 1
    %p512 = por %p510, %p511
    %p514 = scmp.ne.s32.totalorder %s497, %s513
    %p515 = scmp.eq.s32.totalorder %s31, 0
    %p516 = por %p514, %p515
    %p517 = scmp.le.s32.totalorder 1, %s25
    %p518 = scmp.lt.s32.totalorder %s25, 3
    %p519 = pnand %p517, %p518
    %p520 = pneg %p519
    // Predicated region
    $region9: #{transformer_encoder_pallas.1} parent=5 // pred_check
      _
    $region10: #{transformer_encoder_pallas.1} parent=5 // pred_check_branch
      %522 = sbr.rel (%p519) target = $region12
    $region11: #{transformer_encoder_pallas.1} parent=5 // pred_region
      %s523 = ssub.s32 %s25, 1
      // Predicated region
      $region13: #{transformer_encoder_pallas.1} parent=11 // pred_check
        %p524 = pneg %p46
      $region14: #{transformer_encoder_pallas.1} parent=11 // pred_check_branch
        %526 = sbr.rel (%p524) target = $region16
      $region15: #{transformer_encoder_pallas.1} parent=11 // pred_region
        _
      $region16: #{transformer_encoder_pallas.1} parent=11 // pred_fallthru
        _
    $region12: #{transformer_encoder_pallas.1} parent=5 // pred_fallthru
      _
    %p527 = scmp.lt.s32.totalorder %s25, 2
    // Predicated region
    $region17: #{transformer_encoder_pallas.1} parent=5 // pred_check
      %p528 = pneg %p527
    $region18: #{transformer_encoder_pallas.1} parent=5 // pred_check_branch
      %530 = sbr.rel (%p528) target = $region20
    $region19: #{transformer_encoder_pallas.1} parent=5 // pred_region
      // Predicated region
      $region21: #{transformer_encoder_pallas.1} parent=19 // pred_check
        %p531 = pneg %p66
      $region22: #{transformer_encoder_pallas.1} parent=19 // pred_check_branch
        %533 = sbr.rel (%p531) target = $region24
      $region23: #{transformer_encoder_pallas.1} parent=19 // pred_region
        %p534 = scmp.lt.s32.totalorder %s25, 1
        %s535 = scalar_select %p534, %s25, 1
        %s536 = smul.addr %s535, 32
        %s537 = smul.addr %s536, 8
        %s538 = scalar_lea.vmem %s1, %s537
      $region24: #{transformer_encoder_pallas.1} parent=19 // pred_fallthru
        _
      // Predicated region
      $region25: #{transformer_encoder_pallas.1} parent=19 // pred_check
        %p539 = pneg %p92
      $region26: #{transformer_encoder_pallas.1} parent=19 // pred_check_branch
        %541 = sbr.rel (%p539) target = $region28
      $region27: #{transformer_encoder_pallas.1} parent=19 // pred_region
        %p542 = scmp.lt.s32.totalorder %s25, 1
        %s543 = scalar_select %p542, %s25, 1
        %s544 = smul.addr %s543, 8
        %s545 = scalar_lea.vmem %s2, %s544
      $region28: #{transformer_encoder_pallas.1} parent=19 // pred_fallthru
        _
      // Predicated region
      $region29: #{transformer_encoder_pallas.1} parent=19 // pred_check
        %p546 = pneg %p118
      $region30: #{transformer_encoder_pallas.1} parent=19 // pred_check_branch
        %548 = sbr.rel (%p546) target = $region32
      $region31: #{transformer_encoder_pallas.1} parent=19 // pred_region
        %p549 = scmp.lt.s32.totalorder %s25, 1
        %s550 = scalar_select %p549, %s25, 1
        %s551 = smul.addr %s550, 32
        %s552 = smul.addr %s551, 8
        %s553 = scalar_lea.vmem %s3, %s552
      $region32: #{transformer_encoder_pallas.1} parent=19 // pred_fallthru
        _
      // Predicated region
      $region33: #{transformer_encoder_pallas.1} parent=19 // pred_check
        %p554 = pneg %p144
      $region34: #{transformer_encoder_pallas.1} parent=19 // pred_check_branch
        %556 = sbr.rel (%p554) target = $region36
      $region35: #{transformer_encoder_pallas.1} parent=19 // pred_region
        %p557 = scmp.lt.s32.totalorder %s25, 1
        %s558 = scalar_select %p557, %s25, 1
        %s559 = smul.addr %s558, 8
        %s560 = scalar_lea.vmem %s4, %s559
      $region36: #{transformer_encoder_pallas.1} parent=19 // pred_fallthru
        _
      // Predicated region
      $region37: #{transformer_encoder_pallas.1} parent=19 // pred_check
        %p561 = pneg %p170
      $region38: #{transformer_encoder_pallas.1} parent=19 // pred_check_branch
        %563 = sbr.rel (%p561) target = $region40
      $region39: #{transformer_encoder_pallas.1} parent=19 // pred_region
        %p564 = scmp.lt.s32.totalorder %s25, 1
        %s565 = scalar_select %p564, %s25, 1
        %s566 = smul.addr %s565, 32
        %s567 = smul.addr %s566, 8
        %s568 = scalar_lea.vmem %s5, %s567
      $region40: #{transformer_encoder_pallas.1} parent=19 // pred_fallthru
        _
      // Predicated region
      $region41: #{transformer_encoder_pallas.1} parent=19 // pred_check
        %p569 = pneg %p196
      $region42: #{transformer_encoder_pallas.1} parent=19 // pred_check_branch
        %571 = sbr.rel (%p569) target = $region44
      $region43: #{transformer_encoder_pallas.1} parent=19 // pred_region
        %p572 = scmp.lt.s32.totalorder %s25, 1
        %s573 = scalar_select %p572, %s25, 1
        %s574 = smul.addr %s573, 8
        %s575 = scalar_lea.vmem %s6, %s574
      $region44: #{transformer_encoder_pallas.1} parent=19 // pred_fallthru
        _
      // Predicated region
      $region45: #{transformer_encoder_pallas.1} parent=19 // pred_check
        %p576 = pneg %p222
      $region46: #{transformer_encoder_pallas.1} parent=19 // pred_check_branch
        %578 = sbr.rel (%p576) target = $region48
      $region47: #{transformer_encoder_pallas.1} parent=19 // pred_region
        %p579 = scmp.lt.s32.totalorder %s25, 1
        %s580 = scalar_select %p579, %s25, 1
        %s581 = smul.addr %s580, 8
        %s582 = smul.addr %s581, 8
        %s583 = scalar_lea.vmem %s7, %s582
      $region48: #{transformer_encoder_pallas.1} parent=19 // pred_fallthru
        _
      // Predicated region
      $region49: #{transformer_encoder_pallas.1} parent=19 // pred_check
        %p584 = pneg %p248
      $region50: #{transformer_encoder_pallas.1} parent=19 // pred_check_branch
        %586 = sbr.rel (%p584) target = $region52
      $region51: #{transformer_encoder_pallas.1} parent=19 // pred_region
        %p587 = scmp.lt.s32.totalorder %s25, 1
        %s588 = scalar_select %p587, %s25, 1
        %s589 = scalar_lea.vmem %s8, %s588
      $region52: #{transformer_encoder_pallas.1} parent=19 // pred_fallthru
        _
      // Predicated region
      $region53: #{transformer_encoder_pallas.1} parent=19 // pred_check
        %p590 = pneg %p274
      $region54: #{transformer_encoder_pallas.1} parent=19 // pred_check_branch
        %592 = sbr.rel (%p590) target = $region56
      $region55: #{transformer_encoder_pallas.1} parent=19 // pred_region
        %p593 = scmp.lt.s32.totalorder %s25, 1
        %s594 = scalar_select %p593, %s25, 1
        %s595 = smul.addr %s594, 8
        %s596 = smul.addr %s595, 8
        %s597 = scalar_lea.vmem %s9, %s596
      $region56: #{transformer_encoder_pallas.1} parent=19 // pred_fallthru
        _
      // Predicated region
      $region57: #{transformer_encoder_pallas.1} parent=19 // pred_check
        %p598 = pneg %p300
      $region58: #{transformer_encoder_pallas.1} parent=19 // pred_check_branch
        %600 = sbr.rel (%p598) target = $region60
      $region59: #{transformer_encoder_pallas.1} parent=19 // pred_region
        %p601 = scmp.lt.s32.totalorder %s25, 1
        %s602 = scalar_select %p601, %s25, 1
        %s603 = scalar_lea.vmem %s10, %s602
      $region60: #{transformer_encoder_pallas.1} parent=19 // pred_fallthru
        _
      // Predicated region
      $region61: #{transformer_encoder_pallas.1} parent=19 // pred_check
        %p604 = pneg %p326
      $region62: #{transformer_encoder_pallas.1} parent=19 // pred_check_branch
        %606 = sbr.rel (%p604) target = $region64
      $region63: #{transformer_encoder_pallas.1} parent=19 // pred_region
        %p607 = scmp.lt.s32.totalorder %s25, 1
        %s608 = scalar_select %p607, %s25, 1
        %s609 = smul.addr %s608, 16
        %s610 = smul.addr %s609, 8
        %s611 = scalar_lea.vmem %s11, %s610
      $region64: #{transformer_encoder_pallas.1} parent=19 // pred_fallthru
        _
      // Predicated region
      $region65: #{transformer_encoder_pallas.1} parent=19 // pred_check
        %p612 = pneg %p352
      $region66: #{transformer_encoder_pallas.1} parent=19 // pred_check_branch
        %614 = sbr.rel (%p612) target = $region68
      $region67: #{transformer_encoder_pallas.1} parent=19 // pred_region
        %p615 = scmp.lt.s32.totalorder %s25, 1
        %s616 = scalar_select %p615, %s25, 1
        %s617 = scalar_lea.vmem %s12, %s616
      $region68: #{transformer_encoder_pallas.1} parent=19 // pred_fallthru
        _
      // Predicated region
      $region69: #{transformer_encoder_pallas.1} parent=19 // pred_check
        %p618 = pneg %p378
      $region70: #{transformer_encoder_pallas.1} parent=19 // pred_check_branch
        %620 = sbr.rel (%p618) target = $region72
      $region71: #{transformer_encoder_pallas.1} parent=19 // pred_region
        %p621 = scmp.lt.s32.totalorder %s25, 1
        %s622 = scalar_select %p621, %s25, 1
        %s623 = scalar_lea.vmem %s13, %s622
      $region72: #{transformer_encoder_pallas.1} parent=19 // pred_fallthru
        _
      // Predicated region
      $region73: #{transformer_encoder_pallas.1} parent=19 // pred_check
        %p624 = pneg %p404
      $region74: #{transformer_encoder_pallas.1} parent=19 // pred_check_branch
        %626 = sbr.rel (%p624) target = $region76
      $region75: #{transformer_encoder_pallas.1} parent=19 // pred_region
        %p627 = scmp.lt.s32.totalorder %s25, 1
        %s628 = scalar_select %p627, %s25, 1
        %s629 = scalar_lea.vmem %s14, %s628
      $region76: #{transformer_encoder_pallas.1} parent=19 // pred_fallthru
        _
      // Predicated region
      $region77: #{transformer_encoder_pallas.1} parent=19 // pred_check
        %p630 = pneg %p430
      $region78: #{transformer_encoder_pallas.1} parent=19 // pred_check_branch
        %632 = sbr.rel (%p630) target = $region80
      $region79: #{transformer_encoder_pallas.1} parent=19 // pred_region
        %p633 = scmp.lt.s32.totalorder %s25, 1
        %s634 = scalar_select %p633, %s25, 1
        %s635 = scalar_lea.vmem %s15, %s634
      $region80: #{transformer_encoder_pallas.1} parent=19 // pred_fallthru
        _
      // Predicated region
      $region81: #{transformer_encoder_pallas.1} parent=19 // pred_check
        %p636 = pneg %p456
      $region82: #{transformer_encoder_pallas.1} parent=19 // pred_check_branch
        %638 = sbr.rel (%p636) target = $region84
      $region83: #{transformer_encoder_pallas.1} parent=19 // pred_region
        %p639 = scmp.lt.s32.totalorder %s25, 1
        %s640 = scalar_select %p639, %s25, 1
        %s641 = scalar_lea.vmem %s16, %s640
      $region84: #{transformer_encoder_pallas.1} parent=19 // pred_fallthru
        _
    $region20: #{transformer_encoder_pallas.1} parent=5 // pred_fallthru
      _
    %p642 = scmp.le.s32.totalorder 1, %s25
    %p643 = scmp.lt.s32.totalorder %s25, 3
    %p644 = pnand %p642, %p643
    %p645 = pneg %p644
    // Predicated region
    $region85: #{transformer_encoder_pallas.1} parent=5 // pred_check
      _
    $region86: #{transformer_encoder_pallas.1} parent=5 // pred_check_branch
      %647 = sbr.rel (%p644) target = $region88
    $region87: #{transformer_encoder_pallas.1} parent=5 // pred_region
      %s648 = ssub.s32 %s25, 1
      %p649 = pneg %p46
      %p650 = pneg %p43
      %p651 = scmp.lt.s32.totalorder %s30, 1
      %s652 = scalar_select %p651, %s30, 1
      %s653 = smul.addr %s652, 32
      %s654 = smul.addr %s653, 8
      %s655 = scalar_lea.vmem %s1, %s654
      %p656 = pneg %p72
      %p657 = pneg %p69
      %p658 = scmp.lt.s32.totalorder %s30, 1
      %s659 = scalar_select %p658, %s30, 1
      %s660 = smul.addr %s659, 8
      %s661 = scalar_lea.vmem %s2, %s660
      %p662 = pneg %p98
      %p663 = pneg %p95
      %p664 = scmp.lt.s32.totalorder %s30, 1
      %s665 = scalar_select %p664, %s30, 1
      %s666 = smul.addr %s665, 32
      %s667 = smul.addr %s666, 8
      %s668 = scalar_lea.vmem %s3, %s667
      %p669 = pneg %p124
      %p670 = pneg %p121
      %p671 = scmp.lt.s32.totalorder %s30, 1
      %s672 = scalar_select %p671, %s30, 1
      %s673 = smul.addr %s672, 8
      %s674 = scalar_lea.vmem %s4, %s673
      %p675 = pneg %p150
      %p676 = pneg %p147
      %p677 = scmp.lt.s32.totalorder %s30, 1
      %s678 = scalar_select %p677, %s30, 1
      %s679 = smul.addr %s678, 32
      %s680 = smul.addr %s679, 8
      %s681 = scalar_lea.vmem %s5, %s680
      %p682 = pneg %p176
      %p683 = pneg %p173
      %p684 = scmp.lt.s32.totalorder %s30, 1
      %s685 = scalar_select %p684, %s30, 1
      %s686 = smul.addr %s685, 8
      %s687 = scalar_lea.vmem %s6, %s686
      %p688 = pneg %p202
      %p689 = pneg %p199
      %p690 = scmp.lt.s32.totalorder %s30, 1
      %s691 = scalar_select %p690, %s30, 1
      %s692 = smul.addr %s691, 8
      %s693 = smul.addr %s692, 8
      %s694 = scalar_lea.vmem %s7, %s693
      %p695 = pneg %p228
      %p696 = pneg %p225
      %p697 = scmp.lt.s32.totalorder %s30, 1
      %s698 = scalar_select %p697, %s30, 1
      %s699 = scalar_lea.vmem %s8, %s698
      %p700 = pneg %p254
      %p701 = pneg %p251
      %p702 = scmp.lt.s32.totalorder %s30, 1
      %s703 = scalar_select %p702, %s30, 1
      %s704 = smul.addr %s703, 8
      %s705 = smul.addr %s704, 8
      %s706 = scalar_lea.vmem %s9, %s705
      %p707 = pneg %p280
      %p708 = pneg %p277
      %p709 = scmp.lt.s32.totalorder %s30, 1
      %s710 = scalar_select %p709, %s30, 1
      %s711 = scalar_lea.vmem %s10, %s710
      %p712 = pneg %p306
      %p713 = pneg %p303
      %p714 = scmp.lt.s32.totalorder %s30, 1
      %s715 = scalar_select %p714, %s30, 1
      %s716 = smul.addr %s715, 16
      %s717 = smul.addr %s716, 8
      %s718 = scalar_lea.vmem %s11, %s717
      %p719 = pneg %p332
      %p720 = pneg %p329
      %p721 = scmp.lt.s32.totalorder %s30, 1
      %s722 = scalar_select %p721, %s30, 1
      %s723 = scalar_lea.vmem %s12, %s722
      %p724 = pneg %p358
      %p725 = pneg %p355
      %p726 = scmp.lt.s32.totalorder %s30, 1
      %s727 = scalar_select %p726, %s30, 1
      %s728 = scalar_lea.vmem %s13, %s727
      %p729 = pneg %p384
      %p730 = pneg %p381
      %p731 = scmp.lt.s32.totalorder %s30, 1
      %s732 = scalar_select %p731, %s30, 1
      %s733 = scalar_lea.vmem %s14, %s732
      %p734 = pneg %p410
      %p735 = pneg %p407
      %p736 = scmp.lt.s32.totalorder %s30, 1
      %s737 = scalar_select %p736, %s30, 1
      %s738 = scalar_lea.vmem %s15, %s737
      %p739 = pneg %p436
      %p740 = pneg %p433
      %p741 = scmp.lt.s32.totalorder %s30, 1
      %s742 = scalar_select %p741, %s30, 1
      %s743 = scalar_lea.vmem %s16, %s742
      %p744 = pneg %p462
      %p745 = pneg %p459
      %p746 = pneg %p483
      %p747 = pneg %p480
      %p748 = pneg %p509
      %p749 = pneg %p506
      %p750 = scmp.lt.s32.totalorder %s30, 1
      %s751 = scalar_select %p750, %s30, 1
      %s752 = smul.addr %s751, 2
      %s753 = smul.addr %s752, 8
      %s754 = scalar_lea.vmem %s18, %s753
      %p755 = scmp.lt.s32.totalorder %s30, 1
      %s756 = scalar_select %p755, %s30, 1
      %s757 = smul.addr %s756, 32
      %s758 = smul.addr %s757, 8
      %s759 = scalar_lea.vmem %s1, %s758
      %p760 = scmp.lt.s32.totalorder %s30, 1
      %s761 = scalar_select %p760, %s30, 1
      %s762 = smul.addr %s761, 8
      %s763 = scalar_lea.vmem %s2, %s762
      %p764 = scmp.lt.s32.totalorder %s30, 1
      %s765 = scalar_select %p764, %s30, 1
      %s766 = smul.addr %s765, 32
      %s767 = smul.addr %s766, 8
      %s768 = scalar_lea.vmem %s3, %s767
      %p769 = scmp.lt.s32.totalorder %s30, 1
      %s770 = scalar_select %p769, %s30, 1
      %s771 = smul.addr %s770, 8
      %s772 = scalar_lea.vmem %s4, %s771
      %p773 = scmp.lt.s32.totalorder %s30, 1
      %s774 = scalar_select %p773, %s30, 1
      %s775 = smul.addr %s774, 32
      %s776 = smul.addr %s775, 8
      %s777 = scalar_lea.vmem %s5, %s776
      %p778 = scmp.lt.s32.totalorder %s30, 1
      %s779 = scalar_select %p778, %s30, 1
      %s780 = smul.addr %s779, 8
      %s781 = scalar_lea.vmem %s6, %s780
      %p782 = scmp.lt.s32.totalorder %s30, 1
      %s783 = scalar_select %p782, %s30, 1
      %s784 = smul.addr %s783, 8
      %s785 = smul.addr %s784, 8
      %s786 = scalar_lea.vmem %s7, %s785
      %p787 = scmp.lt.s32.totalorder %s30, 1
      %s788 = scalar_select %p787, %s30, 1
      %s789 = scalar_lea.vmem %s8, %s788
      %p790 = scmp.lt.s32.totalorder %s30, 1
      %s791 = scalar_select %p790, %s30, 1
      %s792 = smul.addr %s791, 8
      %s793 = smul.addr %s792, 8
      %s794 = scalar_lea.vmem %s9, %s793
      %p795 = scmp.lt.s32.totalorder %s30, 1
      %s796 = scalar_select %p795, %s30, 1
      %s797 = scalar_lea.vmem %s10, %s796
      %p798 = scmp.lt.s32.totalorder %s30, 1
      %s799 = scalar_select %p798, %s30, 1
      %s800 = smul.addr %s799, 16
      %s801 = smul.addr %s800, 8
      %s802 = scalar_lea.vmem %s11, %s801
      %p803 = scmp.lt.s32.totalorder %s30, 1
      %s804 = scalar_select %p803, %s30, 1
      %s805 = scalar_lea.vmem %s12, %s804
      %p806 = scmp.lt.s32.totalorder %s30, 1
      %s807 = scalar_select %p806, %s30, 1
      %s808 = scalar_lea.vmem %s13, %s807
      %p809 = scmp.lt.s32.totalorder %s30, 1
      %s810 = scalar_select %p809, %s30, 1
      %s811 = scalar_lea.vmem %s14, %s810
      %p812 = scmp.lt.s32.totalorder %s30, 1
      %s813 = scalar_select %p812, %s30, 1
      %s814 = scalar_lea.vmem %s15, %s813
      %p815 = scmp.lt.s32.totalorder %s30, 1
      %s816 = scalar_select %p815, %s30, 1
      %s817 = scalar_lea.vmem %s16, %s816
      %p818 = scmp.lt.s32.totalorder %s30, 1
      %s819 = scalar_select %p818, %s30, 1
      %s820 = smul.addr %s819, 2
      %s821 = smul.addr %s820, 8
      %s822 = scalar_lea.vmem %s18, %s821
      %p823 = scmp.eq.s32.totalorder %s30, 0
      // Predicated region
      $region89: #{transformer_encoder_pallas.1} parent=87 // pred_check
        %p824 = pneg %p823
      $region90: #{transformer_encoder_pallas.1} parent=87 // pred_check_branch
        %826 = sbr.rel (%p824) target = $region92
      $region91: #{transformer_encoder_pallas.1} parent=87 // pred_region
        %v827 = vld [vmem:[%s0] sm:$0xff]
        %v828 = vld [vmem:[%s0 + $0x8] sm:$0xff]
        %vm829 = vcmask 261120
        %830 = vst.msk [vmem:[#allocation2] sm:$0xff] %vm829, %v827
        %831 = vst.msk [vmem:[#allocation2 + $0x8] sm:$0xff] %vm829, %v828
      $region92: #{transformer_encoder_pallas.1} parent=87 // pred_fallthru
        _
      %v832 = vld [vmem:[#allocation2] sm:$0xff]
      %v833 = vld [vmem:[#allocation2 + $0x8] sm:$0xff]
      %v834 = vld [vmem:[%s759] sm:$0xff]
      %v835 = vld [vmem:[%s759 + $0x8] sm:$0xff]
      %v836 = vld [vmem:[%s759 + $0x10] sm:$0xff]
      %v837 = vld [vmem:[%s759 + $0x18] sm:$0xff]
      %v838 = vld [vmem:[%s759 + $0x20] sm:$0xff]
      %v839 = vld [vmem:[%s759 + $0x28] sm:$0xff]
      %v840 = vld [vmem:[%s759 + $0x30] sm:$0xff]
      %v841 = vld [vmem:[%s759 + $0x38] sm:$0xff]
      %v842 = vld [vmem:[%s759 + $0x40] sm:$0xff]
      %v843 = vld [vmem:[%s759 + $0x48] sm:$0xff]
      %v844 = vld [vmem:[%s759 + $0x50] sm:$0xff]
      %v845 = vld [vmem:[%s759 + $0x58] sm:$0xff]
      %v846 = vld [vmem:[%s759 + $0x60] sm:$0xff]
      %v847 = vld [vmem:[%s759 + $0x68] sm:$0xff]
      %v848 = vld [vmem:[%s759 + $0x70] sm:$0xff]
      %v849 = vld [vmem:[%s759 + $0x78] sm:$0xff]
      %v850 = vld [vmem:[%s759 + $0x80] sm:$0xff]
      %v851 = vld [vmem:[%s759 + $0x88] sm:$0xff]
      %v852 = vld [vmem:[%s759 + $0x90] sm:$0xff]
      %v853 = vld [vmem:[%s759 + $0x98] sm:$0xff]
      %v854 = vld [vmem:[%s759 + $0xa0] sm:$0xff]
      %v855 = vld [vmem:[%s759 + $0xa8] sm:$0xff]
      %v856 = vld [vmem:[%s759 + $0xb0] sm:$0xff]
      %v857 = vld [vmem:[%s759 + $0xb8] sm:$0xff]
      %v858 = vld [vmem:[%s759 + $0xc0] sm:$0xff]
      %v859 = vld [vmem:[%s759 + $0xc8] sm:$0xff]
      %v860 = vld [vmem:[%s759 + $0xd0] sm:$0xff]
      %v861 = vld [vmem:[%s759 + $0xd8] sm:$0xff]
      %v862 = vld [vmem:[%s759 + $0xe0] sm:$0xff]
      %v863 = vld [vmem:[%s759 + $0xe8] sm:$0xff]
      %v864 = vld [vmem:[%s759 + $0xf0] sm:$0xff]
      %v865 = vld [vmem:[%s759 + $0xf8] sm:$0xff]
      %v866 = vld [vmem:[%s763] sm:$0x1]
      %v867 = vld [vmem:[%s763 + $0x1] sm:$0x1]
      %v868 = vld [vmem:[%s763 + $0x2] sm:$0x1]
      %v869 = vld [vmem:[%s763 + $0x3] sm:$0x1]
      %v870 = vld [vmem:[%s763 + $0x4] sm:$0x1]
      %v871 = vld [vmem:[%s763 + $0x5] sm:$0x1]
      %v872 = vld [vmem:[%s763 + $0x6] sm:$0x1]
      %v873 = vld [vmem:[%s763 + $0x7] sm:$0x1]
      %v882 = vperm.slane %v866, 0
      %v883 = vperm.slane %v867, 0
      %v884 = vperm.slane %v868, 0
      %v885 = vperm.slane %v869, 0
      %v886 = vperm.slane %v870, 0
      %v887 = vperm.slane %v871, 0
      %v888 = vperm.slane %v872, 0
      %v889 = vperm.slane %v873, 0
      %vm898 = vcmask 261120
      %v900 = vsel %vm898, %v832, 0
      %902 = vmatpush.msra.mxu0 0.0
      %903 = vmatpush.msra.mxu0 0.0
      %904 = vmatpush.msra.mxu0 0.0
      %905 = vmatpush.msra.mxu0 0.0
      %906 = vmatpush.msra.mxu0 0.0
      %907 = vmatpush.msra.mxu0 0.0
      %908 = vmatpush.msra.mxu0 0.0
      %909 = vmatpush.msra.mxu0 0.0
      %910 = vmatpush.msra.mxu0 0.0
      %911 = vmatpush.msra.mxu0 0.0
      %912 = vmatpush.msra.mxu0 0.0
      %913 = vmatpush.msra.mxu0 0.0
      %914 = vmatpush.msra.mxu0 %v837
      %915 = vmatpush.msra.mxu0 %v836
      %916 = vmatpush.msra.mxu0 %v835
      %917 = vmatpush.msra.mxu0 %v834
      %918 = vmatmul.f32.gmra.mxu0 %v900
      %v919 = vpop.f32.mrf.mxu0
      %v920 = vadd.f32 %v882, %v919
      %921 = vdwg.mxu0
      %v923 = vsel %vm898, %v833, 0
      %925 = vmatpush.msra.mxu0 0.0
      %926 = vmatpush.msra.mxu0 0.0
      %927 = vmatpush.msra.mxu0 0.0
      %928 = vmatpush.msra.mxu0 0.0
      %929 = vmatpush.msra.mxu0 0.0
      %930 = vmatpush.msra.mxu0 0.0
      %931 = vmatpush.msra.mxu0 0.0
      %932 = vmatpush.msra.mxu0 0.0
      %933 = vmatpush.msra.mxu0 0.0
      %934 = vmatpush.msra.mxu0 0.0
      %935 = vmatpush.msra.mxu0 0.0
      %936 = vmatpush.msra.mxu0 0.0
      %937 = vmatpush.msra.mxu0 %v841
      %938 = vmatpush.msra.mxu0 %v840
      %939 = vmatpush.msra.mxu0 %v839
      %940 = vmatpush.msra.mxu0 %v838
      %941 = vmatmul.f32.gmra.mxu0 %v923
      %v942 = vpop.f32.mrf.mxu0
      %v943 = vadd.f32 %v883, %v942
      %944 = vdwg.mxu0
      %945 = vmatpush.msra.mxu0 0.0
      %946 = vmatpush.msra.mxu0 0.0
      %947 = vmatpush.msra.mxu0 0.0
      %948 = vmatpush.msra.mxu0 0.0
      %949 = vmatpush.msra.mxu0 0.0
      %950 = vmatpush.msra.mxu0 0.0
      %951 = vmatpush.msra.mxu0 0.0
      %952 = vmatpush.msra.mxu0 0.0
      %953 = vmatpush.msra.mxu0 0.0
      %954 = vmatpush.msra.mxu0 0.0
      %955 = vmatpush.msra.mxu0 0.0
      %956 = vmatpush.msra.mxu0 0.0
      %957 = vmatpush.msra.mxu0 %v845
      %958 = vmatpush.msra.mxu0 %v844
      %959 = vmatpush.msra.mxu0 %v843
      %960 = vmatpush.msra.mxu0 %v842
      %961 = vmatmul.f32.gmra.mxu0 %v900
      %v962 = vpop.f32.mrf.mxu0
      %v963 = vadd.f32 %v884, %v962
      %964 = vdwg.mxu0
      %965 = vmatpush.msra.mxu0 0.0
      %966 = vmatpush.msra.mxu0 0.0
      %967 = vmatpush.msra.mxu0 0.0
      %968 = vmatpush.msra.mxu0 0.0
      %969 = vmatpush.msra.mxu0 0.0
      %970 = vmatpush.msra.mxu0 0.0
      %971 = vmatpush.msra.mxu0 0.0
      %972 = vmatpush.msra.mxu0 0.0
      %973 = vmatpush.msra.mxu0 0.0
      %974 = vmatpush.msra.mxu0 0.0
      %975 = vmatpush.msra.mxu0 0.0
      %976 = vmatpush.msra.mxu0 0.0
      %977 = vmatpush.msra.mxu0 %v849
      %978 = vmatpush.msra.mxu0 %v848
      %979 = vmatpush.msra.mxu0 %v847
      %980 = vmatpush.msra.mxu0 %v846
      %981 = vmatmul.f32.gmra.mxu0 %v923
      %v982 = vpop.f32.mrf.mxu0
      %v983 = vadd.f32 %v885, %v982
      %984 = vdwg.mxu0
      %985 = vmatpush.msra.mxu0 0.0
      %986 = vmatpush.msra.mxu0 0.0
      %987 = vmatpush.msra.mxu0 0.0
      %988 = vmatpush.msra.mxu0 0.0
      %989 = vmatpush.msra.mxu0 0.0
      %990 = vmatpush.msra.mxu0 0.0
      %991 = vmatpush.msra.mxu0 0.0
      %992 = vmatpush.msra.mxu0 0.0
      %993 = vmatpush.msra.mxu0 0.0
      %994 = vmatpush.msra.mxu0 0.0
      %995 = vmatpush.msra.mxu0 0.0
      %996 = vmatpush.msra.mxu0 0.0
      %997 = vmatpush.msra.mxu0 %v853
      %998 = vmatpush.msra.mxu0 %v852
      %999 = vmatpush.msra.mxu0 %v851
      %1000 = vmatpush.msra.mxu0 %v850
      %1001 = vmatmul.f32.gmra.mxu0 %v900
      %v1002 = vpop.f32.mrf.mxu0
      %v1003 = vadd.f32 %v886, %v1002
      %1004 = vdwg.mxu0
      %1005 = vmatpush.msra.mxu0 0.0
      %1006 = vmatpush.msra.mxu0 0.0
      %1007 = vmatpush.msra.mxu0 0.0
      %1008 = vmatpush.msra.mxu0 0.0
      %1009 = vmatpush.msra.mxu0 0.0
      %1010 = vmatpush.msra.mxu0 0.0
      %1011 = vmatpush.msra.mxu0 0.0
      %1012 = vmatpush.msra.mxu0 0.0
      %1013 = vmatpush.msra.mxu0 0.0
      %1014 = vmatpush.msra.mxu0 0.0
      %1015 = vmatpush.msra.mxu0 0.0
      %1016 = vmatpush.msra.mxu0 0.0
      %1017 = vmatpush.msra.mxu0 %v857
      %1018 = vmatpush.msra.mxu0 %v856
      %1019 = vmatpush.msra.mxu0 %v855
      %1020 = vmatpush.msra.mxu0 %v854
      %1021 = vmatmul.f32.gmra.mxu0 %v923
      %v1022 = vpop.f32.mrf.mxu0
      %v1023 = vadd.f32 %v887, %v1022
      %1024 = vdwg.mxu0
      %1025 = vmatpush.msra.mxu0 0.0
      %1026 = vmatpush.msra.mxu0 0.0
      %1027 = vmatpush.msra.mxu0 0.0
      %1028 = vmatpush.msra.mxu0 0.0
      %1029 = vmatpush.msra.mxu0 0.0
      %1030 = vmatpush.msra.mxu0 0.0
      %1031 = vmatpush.msra.mxu0 0.0
      %1032 = vmatpush.msra.mxu0 0.0
      %1033 = vmatpush.msra.mxu0 0.0
      %1034 = vmatpush.msra.mxu0 0.0
      %1035 = vmatpush.msra.mxu0 0.0
      %1036 = vmatpush.msra.mxu0 0.0
      %1037 = vmatpush.msra.mxu0 %v861
      %1038 = vmatpush.msra.mxu0 %v860
      %1039 = vmatpush.msra.mxu0 %v859
      %1040 = vmatpush.msra.mxu0 %v858
      %1041 = vmatmul.f32.gmra.mxu0 %v900
      %v1042 = vpop.f32.mrf.mxu0
      %v1043 = vadd.f32 %v888, %v1042
      %1044 = vdwg.mxu0
      %1045 = vmatpush.msra.mxu0 0.0
      %1046 = vmatpush.msra.mxu0 0.0
      %1047 = vmatpush.msra.mxu0 0.0
      %1048 = vmatpush.msra.mxu0 0.0
      %1049 = vmatpush.msra.mxu0 0.0
      %1050 = vmatpush.msra.mxu0 0.0
      %1051 = vmatpush.msra.mxu0 0.0
      %1052 = vmatpush.msra.mxu0 0.0
      %1053 = vmatpush.msra.mxu0 0.0
      %1054 = vmatpush.msra.mxu0 0.0
      %1055 = vmatpush.msra.mxu0 0.0
      %1056 = vmatpush.msra.mxu0 0.0
      %1057 = vmatpush.msra.mxu0 %v865
      %1058 = vmatpush.msra.mxu0 %v864
      %1059 = vmatpush.msra.mxu0 %v863
      %1060 = vmatpush.msra.mxu0 %v862
      %1061 = vmatmul.f32.gmra.mxu0 %v923
      %v1062 = vpop.f32.mrf.mxu0
      %v1063 = vadd.f32 %v889, %v1062
      %1064 = vdwg.mxu0
      %v1065 = vld [vmem:[%s768] sm:$0xff]
      %v1066 = vld [vmem:[%s768 + $0x8] sm:$0xff]
      %v1067 = vld [vmem:[%s768 + $0x10] sm:$0xff]
      %v1068 = vld [vmem:[%s768 + $0x18] sm:$0xff]
      %v1069 = vld [vmem:[%s768 + $0x20] sm:$0xff]
      %v1070 = vld [vmem:[%s768 + $0x28] sm:$0xff]
      %v1071 = vld [vmem:[%s768 + $0x30] sm:$0xff]
      %v1072 = vld [vmem:[%s768 + $0x38] sm:$0xff]
      %v1073 = vld [vmem:[%s768 + $0x40] sm:$0xff]
      %v1074 = vld [vmem:[%s768 + $0x48] sm:$0xff]
      %v1075 = vld [vmem:[%s768 + $0x50] sm:$0xff]
      %v1076 = vld [vmem:[%s768 + $0x58] sm:$0xff]
      %v1077 = vld [vmem:[%s768 + $0x60] sm:$0xff]
      %v1078 = vld [vmem:[%s768 + $0x68] sm:$0xff]
      %v1079 = vld [vmem:[%s768 + $0x70] sm:$0xff]
      %v1080 = vld [vmem:[%s768 + $0x78] sm:$0xff]
      %v1081 = vld [vmem:[%s768 + $0x80] sm:$0xff]
      %v1082 = vld [vmem:[%s768 + $0x88] sm:$0xff]
      %v1083 = vld [vmem:[%s768 + $0x90] sm:$0xff]
      %v1084 = vld [vmem:[%s768 + $0x98] sm:$0xff]
      %v1085 = vld [vmem:[%s768 + $0xa0] sm:$0xff]
      %v1086 = vld [vmem:[%s768 + $0xa8] sm:$0xff]
      %v1087 = vld [vmem:[%s768 + $0xb0] sm:$0xff]
      %v1088 = vld [vmem:[%s768 + $0xb8] sm:$0xff]
      %v1089 = vld [vmem:[%s768 + $0xc0] sm:$0xff]
      %v1090 = vld [vmem:[%s768 + $0xc8] sm:$0xff]
      %v1091 = vld [vmem:[%s768 + $0xd0] sm:$0xff]
      %v1092 = vld [vmem:[%s768 + $0xd8] sm:$0xff]
      %v1093 = vld [vmem:[%s768 + $0xe0] sm:$0xff]
      %v1094 = vld [vmem:[%s768 + $0xe8] sm:$0xff]
      %v1095 = vld [vmem:[%s768 + $0xf0] sm:$0xff]
      %v1096 = vld [vmem:[%s768 + $0xf8] sm:$0xff]
      %v1097 = vld [vmem:[%s772] sm:$0x1]
      %v1098 = vld [vmem:[%s772 + $0x1] sm:$0x1]
      %v1099 = vld [vmem:[%s772 + $0x2] sm:$0x1]
      %v1100 = vld [vmem:[%s772 + $0x3] sm:$0x1]
      %v1101 = vld [vmem:[%s772 + $0x4] sm:$0x1]
      %v1102 = vld [vmem:[%s772 + $0x5] sm:$0x1]
      %v1103 = vld [vmem:[%s772 + $0x6] sm:$0x1]
      %v1104 = vld [vmem:[%s772 + $0x7] sm:$0x1]
      %v1113 = vperm.slane %v1097, 0
      %v1114 = vperm.slane %v1098, 0
      %v1115 = vperm.slane %v1099, 0
      %v1116 = vperm.slane %v1100, 0
      %v1117 = vperm.slane %v1101, 0
      %v1118 = vperm.slane %v1102, 0
      %v1119 = vperm.slane %v1103, 0
      %v1120 = vperm.slane %v1104, 0
      %1129 = vmatpush.msra.mxu0 0.0
      %1130 = vmatpush.msra.mxu0 0.0
      %1131 = vmatpush.msra.mxu0 0.0
      %1132 = vmatpush.msra.mxu0 0.0
      %1133 = vmatpush.msra.mxu0 0.0
      %1134 = vmatpush.msra.mxu0 0.0
      %1135 = vmatpush.msra.mxu0 0.0
      %1136 = vmatpush.msra.mxu0 0.0
      %1137 = vmatpush.msra.mxu0 0.0
      %1138 = vmatpush.msra.mxu0 0.0
      %1139 = vmatpush.msra.mxu0 0.0
      %1140 = vmatpush.msra.mxu0 0.0
      %1141 = vmatpush.msra.mxu0 %v1068
      %1142 = vmatpush.msra.mxu0 %v1067
      %1143 = vmatpush.msra.mxu0 %v1066
      %1144 = vmatpush.msra.mxu0 %v1065
      %1145 = vmatmul.f32.gmra.mxu0 %v900
      %v1146 = vpop.f32.mrf.mxu0
      %v1147 = vadd.f32 %v1113, %v1146
      %1148 = vdwg.mxu0
      %1149 = vmatpush.msra.mxu0 0.0
      %1150 = vmatpush.msra.mxu0 0.0
      %1151 = vmatpush.msra.mxu0 0.0
      %1152 = vmatpush.msra.mxu0 0.0
      %1153 = vmatpush.msra.mxu0 0.0
      %1154 = vmatpush.msra.mxu0 0.0
      %1155 = vmatpush.msra.mxu0 0.0
      %1156 = vmatpush.msra.mxu0 0.0
      %1157 = vmatpush.msra.mxu0 0.0
      %1158 = vmatpush.msra.mxu0 0.0
      %1159 = vmatpush.msra.mxu0 0.0
      %1160 = vmatpush.msra.mxu0 0.0
      %1161 = vmatpush.msra.mxu0 %v1072
      %1162 = vmatpush.msra.mxu0 %v1071
      %1163 = vmatpush.msra.mxu0 %v1070
      %1164 = vmatpush.msra.mxu0 %v1069
      %1165 = vmatmul.f32.gmra.mxu0 %v923
      %v1166 = vpop.f32.mrf.mxu0
      %v1167 = vadd.f32 %v1114, %v1166
      %1168 = vdwg.mxu0
      %1169 = vmatpush.msra.mxu0 0.0
      %1170 = vmatpush.msra.mxu0 0.0
      %1171 = vmatpush.msra.mxu0 0.0
      %1172 = vmatpush.msra.mxu0 0.0
      %1173 = vmatpush.msra.mxu0 0.0
      %1174 = vmatpush.msra.mxu0 0.0
      %1175 = vmatpush.msra.mxu0 0.0
      %1176 = vmatpush.msra.mxu0 0.0
      %1177 = vmatpush.msra.mxu0 0.0
      %1178 = vmatpush.msra.mxu0 0.0
      %1179 = vmatpush.msra.mxu0 0.0
      %1180 = vmatpush.msra.mxu0 0.0
      %1181 = vmatpush.msra.mxu0 %v1076
      %1182 = vmatpush.msra.mxu0 %v1075
      %1183 = vmatpush.msra.mxu0 %v1074
      %1184 = vmatpush.msra.mxu0 %v1073
      %1185 = vmatmul.f32.gmra.mxu0 %v900
      %v1186 = vpop.f32.mrf.mxu0
      %v1187 = vadd.f32 %v1115, %v1186
      %1188 = vdwg.mxu0
      %1189 = vmatpush.msra.mxu0 0.0
      %1190 = vmatpush.msra.mxu0 0.0
      %1191 = vmatpush.msra.mxu0 0.0
      %1192 = vmatpush.msra.mxu0 0.0
      %1193 = vmatpush.msra.mxu0 0.0
      %1194 = vmatpush.msra.mxu0 0.0
      %1195 = vmatpush.msra.mxu0 0.0
      %1196 = vmatpush.msra.mxu0 0.0
      %1197 = vmatpush.msra.mxu0 0.0
      %1198 = vmatpush.msra.mxu0 0.0
      %1199 = vmatpush.msra.mxu0 0.0
      %1200 = vmatpush.msra.mxu0 0.0
      %1201 = vmatpush.msra.mxu0 %v1080
      %1202 = vmatpush.msra.mxu0 %v1079
      %1203 = vmatpush.msra.mxu0 %v1078
      %1204 = vmatpush.msra.mxu0 %v1077
      %1205 = vmatmul.f32.gmra.mxu0 %v923
      %v1206 = vpop.f32.mrf.mxu0
      %v1207 = vadd.f32 %v1116, %v1206
      %1208 = vdwg.mxu0
      %1209 = vmatpush.msra.mxu0 0.0
      %1210 = vmatpush.msra.mxu0 0.0
      %1211 = vmatpush.msra.mxu0 0.0
      %1212 = vmatpush.msra.mxu0 0.0
      %1213 = vmatpush.msra.mxu0 0.0
      %1214 = vmatpush.msra.mxu0 0.0
      %1215 = vmatpush.msra.mxu0 0.0
      %1216 = vmatpush.msra.mxu0 0.0
      %1217 = vmatpush.msra.mxu0 0.0
      %1218 = vmatpush.msra.mxu0 0.0
      %1219 = vmatpush.msra.mxu0 0.0
      %1220 = vmatpush.msra.mxu0 0.0
      %1221 = vmatpush.msra.mxu0 %v1084
      %1222 = vmatpush.msra.mxu0 %v1083
      %1223 = vmatpush.msra.mxu0 %v1082
      %1224 = vmatpush.msra.mxu0 %v1081
      %1225 = vmatmul.f32.gmra.mxu0 %v900
      %v1226 = vpop.f32.mrf.mxu0
      %v1227 = vadd.f32 %v1117, %v1226
      %1228 = vdwg.mxu0
      %1229 = vmatpush.msra.mxu0 0.0
      %1230 = vmatpush.msra.mxu0 0.0
      %1231 = vmatpush.msra.mxu0 0.0
      %1232 = vmatpush.msra.mxu0 0.0
      %1233 = vmatpush.msra.mxu0 0.0
      %1234 = vmatpush.msra.mxu0 0.0
      %1235 = vmatpush.msra.mxu0 0.0
      %1236 = vmatpush.msra.mxu0 0.0
      %1237 = vmatpush.msra.mxu0 0.0
      %1238 = vmatpush.msra.mxu0 0.0
      %1239 = vmatpush.msra.mxu0 0.0
      %1240 = vmatpush.msra.mxu0 0.0
      %1241 = vmatpush.msra.mxu0 %v1088
      %1242 = vmatpush.msra.mxu0 %v1087
      %1243 = vmatpush.msra.mxu0 %v1086
      %1244 = vmatpush.msra.mxu0 %v1085
      %1245 = vmatmul.f32.gmra.mxu0 %v923
      %v1246 = vpop.f32.mrf.mxu0
      %v1247 = vadd.f32 %v1118, %v1246
      %1248 = vdwg.mxu0
      %1249 = vmatpush.msra.mxu0 0.0
      %1250 = vmatpush.msra.mxu0 0.0
      %1251 = vmatpush.msra.mxu0 0.0
      %1252 = vmatpush.msra.mxu0 0.0
      %1253 = vmatpush.msra.mxu0 0.0
      %1254 = vmatpush.msra.mxu0 0.0
      %1255 = vmatpush.msra.mxu0 0.0
      %1256 = vmatpush.msra.mxu0 0.0
      %1257 = vmatpush.msra.mxu0 0.0
      %1258 = vmatpush.msra.mxu0 0.0
      %1259 = vmatpush.msra.mxu0 0.0
      %1260 = vmatpush.msra.mxu0 0.0
      %1261 = vmatpush.msra.mxu0 %v1092
      %1262 = vmatpush.msra.mxu0 %v1091
      %1263 = vmatpush.msra.mxu0 %v1090
      %1264 = vmatpush.msra.mxu0 %v1089
      %1265 = vmatmul.f32.gmra.mxu0 %v900
      %v1266 = vpop.f32.mrf.mxu0
      %v1267 = vadd.f32 %v1119, %v1266
      %1268 = vdwg.mxu0
      %1269 = vmatpush.msra.mxu0 0.0
      %1270 = vmatpush.msra.mxu0 0.0
      %1271 = vmatpush.msra.mxu0 0.0
      %1272 = vmatpush.msra.mxu0 0.0
      %1273 = vmatpush.msra.mxu0 0.0
      %1274 = vmatpush.msra.mxu0 0.0
      %1275 = vmatpush.msra.mxu0 0.0
      %1276 = vmatpush.msra.mxu0 0.0
      %1277 = vmatpush.msra.mxu0 0.0
      %1278 = vmatpush.msra.mxu0 0.0
      %1279 = vmatpush.msra.mxu0 0.0
      %1280 = vmatpush.msra.mxu0 0.0
      %1281 = vmatpush.msra.mxu0 %v1096
      %1282 = vmatpush.msra.mxu0 %v1095
      %1283 = vmatpush.msra.mxu0 %v1094
      %1284 = vmatpush.msra.mxu0 %v1093
      %1285 = vmatmul.f32.gmra.mxu0 %v923
      %v1286 = vpop.f32.mrf.mxu0
      %v1287 = vadd.f32 %v1120, %v1286
      %1288 = vdwg.mxu0
      %v1289 = vld [vmem:[%s777] sm:$0xff]
      %v1290 = vld [vmem:[%s777 + $0x8] sm:$0xff]
      %v1291 = vld [vmem:[%s777 + $0x10] sm:$0xff]
      %v1292 = vld [vmem:[%s777 + $0x18] sm:$0xff]
      %v1293 = vld [vmem:[%s777 + $0x20] sm:$0xff]
      %v1294 = vld [vmem:[%s777 + $0x28] sm:$0xff]
      %v1295 = vld [vmem:[%s777 + $0x30] sm:$0xff]
      %v1296 = vld [vmem:[%s777 + $0x38] sm:$0xff]
      %v1297 = vld [vmem:[%s777 + $0x40] sm:$0xff]
      %v1298 = vld [vmem:[%s777 + $0x48] sm:$0xff]
      %v1299 = vld [vmem:[%s777 + $0x50] sm:$0xff]
      %v1300 = vld [vmem:[%s777 + $0x58] sm:$0xff]
      %v1301 = vld [vmem:[%s777 + $0x60] sm:$0xff]
      %v1302 = vld [vmem:[%s777 + $0x68] sm:$0xff]
      %v1303 = vld [vmem:[%s777 + $0x70] sm:$0xff]
      %v1304 = vld [vmem:[%s777 + $0x78] sm:$0xff]
      %v1305 = vld [vmem:[%s777 + $0x80] sm:$0xff]
      %v1306 = vld [vmem:[%s777 + $0x88] sm:$0xff]
      %v1307 = vld [vmem:[%s777 + $0x90] sm:$0xff]
      %v1308 = vld [vmem:[%s777 + $0x98] sm:$0xff]
      %v1309 = vld [vmem:[%s777 + $0xa0] sm:$0xff]
      %v1310 = vld [vmem:[%s777 + $0xa8] sm:$0xff]
      %v1311 = vld [vmem:[%s777 + $0xb0] sm:$0xff]
      %v1312 = vld [vmem:[%s777 + $0xb8] sm:$0xff]
      %v1313 = vld [vmem:[%s777 + $0xc0] sm:$0xff]
      %v1314 = vld [vmem:[%s777 + $0xc8] sm:$0xff]
      %v1315 = vld [vmem:[%s777 + $0xd0] sm:$0xff]
      %v1316 = vld [vmem:[%s777 + $0xd8] sm:$0xff]
      %v1317 = vld [vmem:[%s777 + $0xe0] sm:$0xff]
      %v1318 = vld [vmem:[%s777 + $0xe8] sm:$0xff]
      %v1319 = vld [vmem:[%s777 + $0xf0] sm:$0xff]
      %v1320 = vld [vmem:[%s777 + $0xf8] sm:$0xff]
      %v1321 = vld [vmem:[%s781] sm:$0x1]
      %v1322 = vld [vmem:[%s781 + $0x1] sm:$0x1]
      %v1323 = vld [vmem:[%s781 + $0x2] sm:$0x1]
      %v1324 = vld [vmem:[%s781 + $0x3] sm:$0x1]
      %v1325 = vld [vmem:[%s781 + $0x4] sm:$0x1]
      %v1326 = vld [vmem:[%s781 + $0x5] sm:$0x1]
      %v1327 = vld [vmem:[%s781 + $0x6] sm:$0x1]
      %v1328 = vld [vmem:[%s781 + $0x7] sm:$0x1]
      %v1337 = vperm.slane %v1321, 0
      %v1338 = vperm.slane %v1322, 0
      %v1339 = vperm.slane %v1323, 0
      %v1340 = vperm.slane %v1324, 0
      %v1341 = vperm.slane %v1325, 0
      %v1342 = vperm.slane %v1326, 0
      %v1343 = vperm.slane %v1327, 0
      %v1344 = vperm.slane %v1328, 0
      %1353 = vmatpush.msra.mxu0 0.0
      %1354 = vmatpush.msra.mxu0 0.0
      %1355 = vmatpush.msra.mxu0 0.0
      %1356 = vmatpush.msra.mxu0 0.0
      %1357 = vmatpush.msra.mxu0 0.0
      %1358 = vmatpush.msra.mxu0 0.0
      %1359 = vmatpush.msra.mxu0 0.0
      %1360 = vmatpush.msra.mxu0 0.0
      %1361 = vmatpush.msra.mxu0 0.0
      %1362 = vmatpush.msra.mxu0 0.0
      %1363 = vmatpush.msra.mxu0 0.0
      %1364 = vmatpush.msra.mxu0 0.0
      %1365 = vmatpush.msra.mxu0 %v1292
      %1366 = vmatpush.msra.mxu0 %v1291
      %1367 = vmatpush.msra.mxu0 %v1290
      %1368 = vmatpush.msra.mxu0 %v1289
      %1369 = vmatmul.f32.gmra.mxu0 %v900
      %v1370 = vpop.f32.mrf.mxu0
      %v1371 = vadd.f32 %v1337, %v1370
      %1372 = vdwg.mxu0
      %1373 = vmatpush.msra.mxu0 0.0
      %1374 = vmatpush.msra.mxu0 0.0
      %1375 = vmatpush.msra.mxu0 0.0
      %1376 = vmatpush.msra.mxu0 0.0
      %1377 = vmatpush.msra.mxu0 0.0
      %1378 = vmatpush.msra.mxu0 0.0
      %1379 = vmatpush.msra.mxu0 0.0
      %1380 = vmatpush.msra.mxu0 0.0
      %1381 = vmatpush.msra.mxu0 0.0
      %1382 = vmatpush.msra.mxu0 0.0
      %1383 = vmatpush.msra.mxu0 0.0
      %1384 = vmatpush.msra.mxu0 0.0
      %1385 = vmatpush.msra.mxu0 %v1296
      %1386 = vmatpush.msra.mxu0 %v1295
      %1387 = vmatpush.msra.mxu0 %v1294
      %1388 = vmatpush.msra.mxu0 %v1293
      %1389 = vmatmul.f32.gmra.mxu0 %v923
      %v1390 = vpop.f32.mrf.mxu0
      %v1391 = vadd.f32 %v1338, %v1390
      %1392 = vdwg.mxu0
      %1393 = vmatpush.msra.mxu0 0.0
      %1394 = vmatpush.msra.mxu0 0.0
      %1395 = vmatpush.msra.mxu0 0.0
      %1396 = vmatpush.msra.mxu0 0.0
      %1397 = vmatpush.msra.mxu0 0.0
      %1398 = vmatpush.msra.mxu0 0.0
      %1399 = vmatpush.msra.mxu0 0.0
      %1400 = vmatpush.msra.mxu0 0.0
      %1401 = vmatpush.msra.mxu0 0.0
      %1402 = vmatpush.msra.mxu0 0.0
      %1403 = vmatpush.msra.mxu0 0.0
      %1404 = vmatpush.msra.mxu0 0.0
      %1405 = vmatpush.msra.mxu0 %v1300
      %1406 = vmatpush.msra.mxu0 %v1299
      %1407 = vmatpush.msra.mxu0 %v1298
      %1408 = vmatpush.msra.mxu0 %v1297
      %1409 = vmatmul.f32.gmra.mxu0 %v900
      %v1410 = vpop.f32.mrf.mxu0
      %v1411 = vadd.f32 %v1339, %v1410
      %1412 = vdwg.mxu0
      %1413 = vmatpush.msra.mxu0 0.0
      %1414 = vmatpush.msra.mxu0 0.0
      %1415 = vmatpush.msra.mxu0 0.0
      %1416 = vmatpush.msra.mxu0 0.0
      %1417 = vmatpush.msra.mxu0 0.0
      %1418 = vmatpush.msra.mxu0 0.0
      %1419 = vmatpush.msra.mxu0 0.0
      %1420 = vmatpush.msra.mxu0 0.0
      %1421 = vmatpush.msra.mxu0 0.0
      %1422 = vmatpush.msra.mxu0 0.0
      %1423 = vmatpush.msra.mxu0 0.0
      %1424 = vmatpush.msra.mxu0 0.0
      %1425 = vmatpush.msra.mxu0 %v1304
      %1426 = vmatpush.msra.mxu0 %v1303
      %1427 = vmatpush.msra.mxu0 %v1302
      %1428 = vmatpush.msra.mxu0 %v1301
      %1429 = vmatmul.f32.gmra.mxu0 %v923
      %v1430 = vpop.f32.mrf.mxu0
      %v1431 = vadd.f32 %v1340, %v1430
      %1432 = vdwg.mxu0
      %1433 = vmatpush.msra.mxu0 0.0
      %1434 = vmatpush.msra.mxu0 0.0
      %1435 = vmatpush.msra.mxu0 0.0
      %1436 = vmatpush.msra.mxu0 0.0
      %1437 = vmatpush.msra.mxu0 0.0
      %1438 = vmatpush.msra.mxu0 0.0
      %1439 = vmatpush.msra.mxu0 0.0
      %1440 = vmatpush.msra.mxu0 0.0
      %1441 = vmatpush.msra.mxu0 0.0
      %1442 = vmatpush.msra.mxu0 0.0
      %1443 = vmatpush.msra.mxu0 0.0
      %1444 = vmatpush.msra.mxu0 0.0
      %1445 = vmatpush.msra.mxu0 %v1308
      %1446 = vmatpush.msra.mxu0 %v1307
      %1447 = vmatpush.msra.mxu0 %v1306
      %1448 = vmatpush.msra.mxu0 %v1305
      %1449 = vmatmul.f32.gmra.mxu0 %v900
      %v1450 = vpop.f32.mrf.mxu0
      %v1451 = vadd.f32 %v1341, %v1450
      %1452 = vdwg.mxu0
      %1453 = vmatpush.msra.mxu0 0.0
      %1454 = vmatpush.msra.mxu0 0.0
      %1455 = vmatpush.msra.mxu0 0.0
      %1456 = vmatpush.msra.mxu0 0.0
      %1457 = vmatpush.msra.mxu0 0.0
      %1458 = vmatpush.msra.mxu0 0.0
      %1459 = vmatpush.msra.mxu0 0.0
      %1460 = vmatpush.msra.mxu0 0.0
      %1461 = vmatpush.msra.mxu0 0.0
      %1462 = vmatpush.msra.mxu0 0.0
      %1463 = vmatpush.msra.mxu0 0.0
      %1464 = vmatpush.msra.mxu0 0.0
      %1465 = vmatpush.msra.mxu0 %v1312
      %1466 = vmatpush.msra.mxu0 %v1311
      %1467 = vmatpush.msra.mxu0 %v1310
      %1468 = vmatpush.msra.mxu0 %v1309
      %1469 = vmatmul.f32.gmra.mxu0 %v923
      %v1470 = vpop.f32.mrf.mxu0
      %v1471 = vadd.f32 %v1342, %v1470
      %1472 = vdwg.mxu0
      %1473 = vmatpush.msra.mxu0 0.0
      %1474 = vmatpush.msra.mxu0 0.0
      %1475 = vmatpush.msra.mxu0 0.0
      %1476 = vmatpush.msra.mxu0 0.0
      %1477 = vmatpush.msra.mxu0 0.0
      %1478 = vmatpush.msra.mxu0 0.0
      %1479 = vmatpush.msra.mxu0 0.0
      %1480 = vmatpush.msra.mxu0 0.0
      %1481 = vmatpush.msra.mxu0 0.0
      %1482 = vmatpush.msra.mxu0 0.0
      %1483 = vmatpush.msra.mxu0 0.0
      %1484 = vmatpush.msra.mxu0 0.0
      %1485 = vmatpush.msra.mxu0 %v1316
      %1486 = vmatpush.msra.mxu0 %v1315
      %1487 = vmatpush.msra.mxu0 %v1314
      %1488 = vmatpush.msra.mxu0 %v1313
      %1489 = vmatmul.f32.gmra.mxu0 %v900
      %v1490 = vpop.f32.mrf.mxu0
      %v1491 = vadd.f32 %v1343, %v1490
      %1492 = vdwg.mxu0
      %1493 = vmatpush.msra.mxu0 0.0
      %1494 = vmatpush.msra.mxu0 0.0
      %1495 = vmatpush.msra.mxu0 0.0
      %1496 = vmatpush.msra.mxu0 0.0
      %1497 = vmatpush.msra.mxu0 0.0
      %1498 = vmatpush.msra.mxu0 0.0
      %1499 = vmatpush.msra.mxu0 0.0
      %1500 = vmatpush.msra.mxu0 0.0
      %1501 = vmatpush.msra.mxu0 0.0
      %1502 = vmatpush.msra.mxu0 0.0
      %1503 = vmatpush.msra.mxu0 0.0
      %1504 = vmatpush.msra.mxu0 0.0
      %1505 = vmatpush.msra.mxu0 %v1320
      %1506 = vmatpush.msra.mxu0 %v1319
      %1507 = vmatpush.msra.mxu0 %v1318
      %1508 = vmatpush.msra.mxu0 %v1317
      %1509 = vmatmul.f32.gmra.mxu0 %v923
      %v1510 = vpop.f32.mrf.mxu0
      %v1511 = vadd.f32 %v1344, %v1510
      %1512 = vdwg.mxu0
      %vm1513 = vcmask 64512
      %v1515 = vsel %vm1513, %v920, 0
      %v1518 = vsel %vm1513, %v1147, 0
      %1520 = vmatpush.xpose.msra.mxu0 0.0
      %1521 = vmatpush.xpose.msra.mxu0 0.0
      %1522 = vmatpush.xpose.msra.mxu0 0.0
      %1523 = vmatpush.xpose.msra.mxu0 0.0
      %1524 = vmatpush.xpose.msra.mxu0 0.0
      %1525 = vmatpush.xpose.msra.mxu0 0.0
      %1526 = vmatpush.xpose.msra.mxu0 0.0
      %1527 = vmatpush.xpose.msra.mxu0 0.0
      %1528 = vmatpush.xpose.msra.mxu0 0.0
      %1529 = vmatpush.xpose.msra.mxu0 0.0
      %1530 = vmatpush.xpose.msra.mxu0 0.0
      %1531 = vmatpush.xpose.msra.mxu0 0.0
      %1532 = vmatpush.xpose.msra.mxu0 0.0
      %1533 = vmatpush.xpose.msra.mxu0 0.0
      %1534 = vmatpush.xpose.msra.mxu0 0.0
      %1535 = vmatpush.xpose.msra.mxu0 %v1518
      %1536 = vmatmul.f32.gmra.mxu0 %v1515
      %v1537 = vpop.f32.mrf.mxu0
      %v1538 = vadd.f32 0.0, %v1537
      %1539 = vdwg.mxu0
      %v1541 = vsel %vm1513, %v943, 0
      %v1544 = vsel %vm1513, %v1167, 0
      %1546 = vmatpush.xpose.msra.mxu0 0.0
      %1547 = vmatpush.xpose.msra.mxu0 0.0
      %1548 = vmatpush.xpose.msra.mxu0 0.0
      %1549 = vmatpush.xpose.msra.mxu0 0.0
      %1550 = vmatpush.xpose.msra.mxu0 0.0
      %1551 = vmatpush.xpose.msra.mxu0 0.0
      %1552 = vmatpush.xpose.msra.mxu0 0.0
      %1553 = vmatpush.xpose.msra.mxu0 0.0
      %1554 = vmatpush.xpose.msra.mxu0 0.0
      %1555 = vmatpush.xpose.msra.mxu0 0.0
      %1556 = vmatpush.xpose.msra.mxu0 0.0
      %1557 = vmatpush.xpose.msra.mxu0 0.0
      %1558 = vmatpush.xpose.msra.mxu0 0.0
      %1559 = vmatpush.xpose.msra.mxu0 0.0
      %1560 = vmatpush.xpose.msra.mxu0 0.0
      %1561 = vmatpush.xpose.msra.mxu0 %v1544
      %1562 = vmatmul.f32.gmra.mxu0 %v1541
      %v1563 = vpop.f32.mrf.mxu0
      %v1564 = vadd.f32 0.0, %v1563
      %1565 = vdwg.mxu0
      %v1567 = vsel %vm1513, %v963, 0
      %v1570 = vsel %vm1513, %v1187, 0
      %1572 = vmatpush.xpose.msra.mxu0 0.0
      %1573 = vmatpush.xpose.msra.mxu0 0.0
      %1574 = vmatpush.xpose.msra.mxu0 0.0
      %1575 = vmatpush.xpose.msra.mxu0 0.0
      %1576 = vmatpush.xpose.msra.mxu0 0.0
      %1577 = vmatpush.xpose.msra.mxu0 0.0
      %1578 = vmatpush.xpose.msra.mxu0 0.0
      %1579 = vmatpush.xpose.msra.mxu0 0.0
      %1580 = vmatpush.xpose.msra.mxu0 0.0
      %1581 = vmatpush.xpose.msra.mxu0 0.0
      %1582 = vmatpush.xpose.msra.mxu0 0.0
      %1583 = vmatpush.xpose.msra.mxu0 0.0
      %1584 = vmatpush.xpose.msra.mxu0 0.0
      %1585 = vmatpush.xpose.msra.mxu0 0.0
      %1586 = vmatpush.xpose.msra.mxu0 0.0
      %1587 = vmatpush.xpose.msra.mxu0 %v1570
      %1588 = vmatmul.f32.gmra.mxu0 %v1567
      %v1589 = vpop.f32.mrf.mxu0
      %v1590 = vadd.f32 0.0, %v1589
      %1591 = vdwg.mxu0
      %v1593 = vsel %vm1513, %v983, 0
      %v1596 = vsel %vm1513, %v1207, 0
      %1598 = vmatpush.xpose.msra.mxu0 0.0
      %1599 = vmatpush.xpose.msra.mxu0 0.0
      %1600 = vmatpush.xpose.msra.mxu0 0.0
      %1601 = vmatpush.xpose.msra.mxu0 0.0
      %1602 = vmatpush.xpose.msra.mxu0 0.0
      %1603 = vmatpush.xpose.msra.mxu0 0.0
      %1604 = vmatpush.xpose.msra.mxu0 0.0
      %1605 = vmatpush.xpose.msra.mxu0 0.0
      %1606 = vmatpush.xpose.msra.mxu0 0.0
      %1607 = vmatpush.xpose.msra.mxu0 0.0
      %1608 = vmatpush.xpose.msra.mxu0 0.0
      %1609 = vmatpush.xpose.msra.mxu0 0.0
      %1610 = vmatpush.xpose.msra.mxu0 0.0
      %1611 = vmatpush.xpose.msra.mxu0 0.0
      %1612 = vmatpush.xpose.msra.mxu0 0.0
      %1613 = vmatpush.xpose.msra.mxu0 %v1596
      %1614 = vmatmul.f32.gmra.mxu0 %v1593
      %v1615 = vpop.f32.mrf.mxu0
      %v1616 = vadd.f32 0.0, %v1615
      %1617 = vdwg.mxu0
      %v1619 = vsel %vm1513, %v1003, 0
      %v1622 = vsel %vm1513, %v1227, 0
      %1624 = vmatpush.xpose.msra.mxu0 0.0
      %1625 = vmatpush.xpose.msra.mxu0 0.0
      %1626 = vmatpush.xpose.msra.mxu0 0.0
      %1627 = vmatpush.xpose.msra.mxu0 0.0
      %1628 = vmatpush.xpose.msra.mxu0 0.0
      %1629 = vmatpush.xpose.msra.mxu0 0.0
      %1630 = vmatpush.xpose.msra.mxu0 0.0
      %1631 = vmatpush.xpose.msra.mxu0 0.0
      %1632 = vmatpush.xpose.msra.mxu0 0.0
      %1633 = vmatpush.xpose.msra.mxu0 0.0
      %1634 = vmatpush.xpose.msra.mxu0 0.0
      %1635 = vmatpush.xpose.msra.mxu0 0.0
      %1636 = vmatpush.xpose.msra.mxu0 0.0
      %1637 = vmatpush.xpose.msra.mxu0 0.0
      %1638 = vmatpush.xpose.msra.mxu0 0.0
      %1639 = vmatpush.xpose.msra.mxu0 %v1622
      %1640 = vmatmul.f32.gmra.mxu0 %v1619
      %v1641 = vpop.f32.mrf.mxu0
      %v1642 = vadd.f32 0.0, %v1641
      %1643 = vdwg.mxu0
      %v1645 = vsel %vm1513, %v1023, 0
      %v1648 = vsel %vm1513, %v1247, 0
      %1650 = vmatpush.xpose.msra.mxu0 0.0
      %1651 = vmatpush.xpose.msra.mxu0 0.0
      %1652 = vmatpush.xpose.msra.mxu0 0.0
      %1653 = vmatpush.xpose.msra.mxu0 0.0
      %1654 = vmatpush.xpose.msra.mxu0 0.0
      %1655 = vmatpush.xpose.msra.mxu0 0.0
      %1656 = vmatpush.xpose.msra.mxu0 0.0
      %1657 = vmatpush.xpose.msra.mxu0 0.0
      %1658 = vmatpush.xpose.msra.mxu0 0.0
      %1659 = vmatpush.xpose.msra.mxu0 0.0
      %1660 = vmatpush.xpose.msra.mxu0 0.0
      %1661 = vmatpush.xpose.msra.mxu0 0.0
      %1662 = vmatpush.xpose.msra.mxu0 0.0
      %1663 = vmatpush.xpose.msra.mxu0 0.0
      %1664 = vmatpush.xpose.msra.mxu0 0.0
      %1665 = vmatpush.xpose.msra.mxu0 %v1648
      %1666 = vmatmul.f32.gmra.mxu0 %v1645
      %v1667 = vpop.f32.mrf.mxu0
      %v1668 = vadd.f32 0.0, %v1667
      %1669 = vdwg.mxu0
      %v1671 = vsel %vm1513, %v1043, 0
      %v1674 = vsel %vm1513, %v1267, 0
      %1676 = vmatpush.xpose.msra.mxu0 0.0
      %1677 = vmatpush.xpose.msra.mxu0 0.0
      %1678 = vmatpush.xpose.msra.mxu0 0.0
      %1679 = vmatpush.xpose.msra.mxu0 0.0
      %1680 = vmatpush.xpose.msra.mxu0 0.0
      %1681 = vmatpush.xpose.msra.mxu0 0.0
      %1682 = vmatpush.xpose.msra.mxu0 0.0
      %1683 = vmatpush.xpose.msra.mxu0 0.0
      %1684 = vmatpush.xpose.msra.mxu0 0.0
      %1685 = vmatpush.xpose.msra.mxu0 0.0
      %1686 = vmatpush.xpose.msra.mxu0 0.0
      %1687 = vmatpush.xpose.msra.mxu0 0.0
      %1688 = vmatpush.xpose.msra.mxu0 0.0
      %1689 = vmatpush.xpose.msra.mxu0 0.0
      %1690 = vmatpush.xpose.msra.mxu0 0.0
      %1691 = vmatpush.xpose.msra.mxu0 %v1674
      %1692 = vmatmul.f32.gmra.mxu0 %v1671
      %v1693 = vpop.f32.mrf.mxu0
      %v1694 = vadd.f32 0.0, %v1693
      %1695 = vdwg.mxu0
      %v1697 = vsel %vm1513, %v1063, 0
      %v1700 = vsel %vm1513, %v1287, 0
      %1702 = vmatpush.xpose.msra.mxu0 0.0
      %1703 = vmatpush.xpose.msra.mxu0 0.0
      %1704 = vmatpush.xpose.msra.mxu0 0.0
      %1705 = vmatpush.xpose.msra.mxu0 0.0
      %1706 = vmatpush.xpose.msra.mxu0 0.0
      %1707 = vmatpush.xpose.msra.mxu0 0.0
      %1708 = vmatpush.xpose.msra.mxu0 0.0
      %1709 = vmatpush.xpose.msra.mxu0 0.0
      %1710 = vmatpush.xpose.msra.mxu0 0.0
      %1711 = vmatpush.xpose.msra.mxu0 0.0
      %1712 = vmatpush.xpose.msra.mxu0 0.0
      %1713 = vmatpush.xpose.msra.mxu0 0.0
      %1714 = vmatpush.xpose.msra.mxu0 0.0
      %1715 = vmatpush.xpose.msra.mxu0 0.0
      %1716 = vmatpush.xpose.msra.mxu0 0.0
      %1717 = vmatpush.xpose.msra.mxu0 %v1700
      %1718 = vmatmul.f32.gmra.mxu0 %v1697
      %v1719 = vpop.f32.mrf.mxu0
      %v1720 = vadd.f32 0.0, %v1719
      %1721 = vdwg.mxu0
      %v1722 = vsel %vm1513, %v1538, -inf
      %1723 = vmax.xlane.f32.xlu0 %v1722
      %v1724 = vpop.xlane.xlu0 %1723
      %v1725 = vsel %vm1513, %v1564, -inf
      %1726 = vmax.xlane.f32.xlu0 %v1725
      %v1727 = vpop.xlane.xlu0 %1726
      %v1728 = vsel %vm1513, %v1590, -inf
      %1729 = vmax.xlane.f32.xlu0 %v1728
      %v1730 = vpop.xlane.xlu0 %1729
      %v1731 = vsel %vm1513, %v1616, -inf
      %1732 = vmax.xlane.f32.xlu0 %v1731
      %v1733 = vpop.xlane.xlu0 %1732
      %v1734 = vsel %vm1513, %v1642, -inf
      %1735 = vmax.xlane.f32.xlu0 %v1734
      %v1736 = vpop.xlane.xlu0 %1735
      %v1737 = vsel %vm1513, %v1668, -inf
      %1738 = vmax.xlane.f32.xlu0 %v1737
      %v1739 = vpop.xlane.xlu0 %1738
      %v1740 = vsel %vm1513, %v1694, -inf
      %1741 = vmax.xlane.f32.xlu0 %v1740
      %v1742 = vpop.xlane.xlu0 %1741
      %v1743 = vsel %vm1513, %v1720, -inf
      %1744 = vmax.xlane.f32.xlu0 %v1743
      %v1745 = vpop.xlane.xlu0 %1744
      %v1746 = vsub.f32 %v1538, %v1724
      %v1747 = vsub.f32 %v1564, %v1727
      %v1748 = vsub.f32 %v1590, %v1730
      %v1749 = vsub.f32 %v1616, %v1733
      %v1750 = vsub.f32 %v1642, %v1736
      %v1751 = vsub.f32 %v1668, %v1739
      %v1752 = vsub.f32 %v1694, %v1742
      %v1753 = vsub.f32 %v1720, %v1745
      %v1754 = vmul.f32 %v1746, 1.442695
      %v1755 = vpow.pop %v1754
      %v1756 = vmul.f32 %v1747, 1.442695
      %v1757 = vpow.pop %v1756
      %v1758 = vmul.f32 %v1748, 1.442695
      %v1759 = vpow.pop %v1758
      %v1760 = vmul.f32 %v1749, 1.442695
      %v1761 = vpow.pop %v1760
      %v1762 = vmul.f32 %v1750, 1.442695
      %v1763 = vpow.pop %v1762
      %v1764 = vmul.f32 %v1751, 1.442695
      %v1765 = vpow.pop %v1764
      %v1766 = vmul.f32 %v1752, 1.442695
      %v1767 = vpow.pop %v1766
      %v1768 = vmul.f32 %v1753, 1.442695
      %v1769 = vpow.pop %v1768
      %v1770 = vsel %vm1513, %v1755, 0.0
      %1771 = vadd.xlane.f32.xlu0 %v1770
      %v1772 = vpop.xlane.xlu0 %1771
      %v1773 = vsel %vm1513, %v1757, 0.0
      %1774 = vadd.xlane.f32.xlu0 %v1773
      %v1775 = vpop.xlane.xlu0 %1774
      %v1776 = vsel %vm1513, %v1759, 0.0
      %1777 = vadd.xlane.f32.xlu0 %v1776
      %v1778 = vpop.xlane.xlu0 %1777
      %v1779 = vsel %vm1513, %v1761, 0.0
      %1780 = vadd.xlane.f32.xlu0 %v1779
      %v1781 = vpop.xlane.xlu0 %1780
      %v1782 = vsel %vm1513, %v1763, 0.0
      %1783 = vadd.xlane.f32.xlu0 %v1782
      %v1784 = vpop.xlane.xlu0 %1783
      %v1785 = vsel %vm1513, %v1765, 0.0
      %1786 = vadd.xlane.f32.xlu0 %v1785
      %v1787 = vpop.xlane.xlu0 %1786
      %v1788 = vsel %vm1513, %v1767, 0.0
      %1789 = vadd.xlane.f32.xlu0 %v1788
      %v1790 = vpop.xlane.xlu0 %1789
      %v1791 = vsel %vm1513, %v1769, 0.0
      %1792 = vadd.xlane.f32.xlu0 %v1791
      %v1793 = vpop.xlane.xlu0 %1792
      %v1794 = vrcp.pop %v1772
      %v1795 = vrcp.pop %v1775
      %v1796 = vrcp.pop %v1778
      %v1797 = vrcp.pop %v1781
      %v1798 = vrcp.pop %v1784
      %v1799 = vrcp.pop %v1787
      %v1800 = vrcp.pop %v1790
      %v1801 = vrcp.pop %v1793
      %v1802 = vmul.f32 %v1755, %v1794
      %v1803 = vmul.f32 %v1757, %v1795
      %v1804 = vmul.f32 %v1759, %v1796
      %v1805 = vmul.f32 %v1761, %v1797
      %v1806 = vmul.f32 %v1763, %v1798
      %v1807 = vmul.f32 %v1765, %v1799
      %v1808 = vmul.f32 %v1767, %v1800
      %v1809 = vmul.f32 %v1769, %v1801
      %v1810 = vadd.f32 %v1802, %v1804
      %v1811 = vadd.f32 %v1803, %v1805
      %v1812 = vadd.f32 %v1810, %v1806
      %v1813 = vadd.f32 %v1811, %v1807
      %v1814 = vadd.f32 %v1812, %v1808
      %v1815 = vadd.f32 %v1813, %v1809
      %v1816 = vmul.f32 %v1814, 0.25
      %v1817 = vmul.f32 %v1815, 0.25
      %1818 = vst.msk [vmem:[%s822] sm:$0xff] %vm1513, %v1816
      %1819 = vst.msk [vmem:[%s822 + $0x8] sm:$0xff] %vm1513, %v1817
      %v1821 = vsel %vm1513, %v1802, 0
      %1823 = vmatpush.msra.mxu0 0.0
      %1824 = vmatpush.msra.mxu0 0.0
      %1825 = vmatpush.msra.mxu0 0.0
      %1826 = vmatpush.msra.mxu0 0.0
      %1827 = vmatpush.msra.mxu0 0.0
      %1828 = vmatpush.msra.mxu0 0.0
      %1829 = vmatpush.msra.mxu0 0.0
      %1830 = vmatpush.msra.mxu0 0.0
      %1831 = vmatpush.msra.mxu0 0.0
      %1832 = vmatpush.msra.mxu0 0.0
      %1833 = vmatpush.msra.mxu0 0.0
      %1834 = vmatpush.msra.mxu0 0.0
      %1835 = vmatpush.msra.mxu0 0.0
      %1836 = vmatpush.msra.mxu0 0.0
      %1837 = vmatpush.msra.mxu0 0.0
      %1838 = vmatpush.msra.mxu0 %v1371
      %1839 = vmatmul.f32.gmra.mxu0 %v1821
      %v1840 = vpop.f32.mrf.mxu0
      %v1841 = vadd.f32 0.0, %v1840
      %1842 = vdwg.mxu0
      %v1844 = vsel %vm1513, %v1803, 0
      %1846 = vmatpush.msra.mxu0 0.0
      %1847 = vmatpush.msra.mxu0 0.0
      %1848 = vmatpush.msra.mxu0 0.0
      %1849 = vmatpush.msra.mxu0 0.0
      %1850 = vmatpush.msra.mxu0 0.0
      %1851 = vmatpush.msra.mxu0 0.0
      %1852 = vmatpush.msra.mxu0 0.0
      %1853 = vmatpush.msra.mxu0 0.0
      %1854 = vmatpush.msra.mxu0 0.0
      %1855 = vmatpush.msra.mxu0 0.0
      %1856 = vmatpush.msra.mxu0 0.0
      %1857 = vmatpush.msra.mxu0 0.0
      %1858 = vmatpush.msra.mxu0 0.0
      %1859 = vmatpush.msra.mxu0 0.0
      %1860 = vmatpush.msra.mxu0 0.0
      %1861 = vmatpush.msra.mxu0 %v1391
      %1862 = vmatmul.f32.gmra.mxu0 %v1844
      %v1863 = vpop.f32.mrf.mxu0
      %v1864 = vadd.f32 0.0, %v1863
      %1865 = vdwg.mxu0
      %v1867 = vsel %vm1513, %v1804, 0
      %1869 = vmatpush.msra.mxu0 0.0
      %1870 = vmatpush.msra.mxu0 0.0
      %1871 = vmatpush.msra.mxu0 0.0
      %1872 = vmatpush.msra.mxu0 0.0
      %1873 = vmatpush.msra.mxu0 0.0
      %1874 = vmatpush.msra.mxu0 0.0
      %1875 = vmatpush.msra.mxu0 0.0
      %1876 = vmatpush.msra.mxu0 0.0
      %1877 = vmatpush.msra.mxu0 0.0
      %1878 = vmatpush.msra.mxu0 0.0
      %1879 = vmatpush.msra.mxu0 0.0
      %1880 = vmatpush.msra.mxu0 0.0
      %1881 = vmatpush.msra.mxu0 0.0
      %1882 = vmatpush.msra.mxu0 0.0
      %1883 = vmatpush.msra.mxu0 0.0
      %1884 = vmatpush.msra.mxu0 %v1411
      %1885 = vmatmul.f32.gmra.mxu0 %v1867
      %v1886 = vpop.f32.mrf.mxu0
      %v1887 = vadd.f32 0.0, %v1886
      %1888 = vdwg.mxu0
      %v1890 = vsel %vm1513, %v1805, 0
      %1892 = vmatpush.msra.mxu0 0.0
      %1893 = vmatpush.msra.mxu0 0.0
      %1894 = vmatpush.msra.mxu0 0.0
      %1895 = vmatpush.msra.mxu0 0.0
      %1896 = vmatpush.msra.mxu0 0.0
      %1897 = vmatpush.msra.mxu0 0.0
      %1898 = vmatpush.msra.mxu0 0.0
      %1899 = vmatpush.msra.mxu0 0.0
      %1900 = vmatpush.msra.mxu0 0.0
      %1901 = vmatpush.msra.mxu0 0.0
      %1902 = vmatpush.msra.mxu0 0.0
      %1903 = vmatpush.msra.mxu0 0.0
      %1904 = vmatpush.msra.mxu0 0.0
      %1905 = vmatpush.msra.mxu0 0.0
      %1906 = vmatpush.msra.mxu0 0.0
      %1907 = vmatpush.msra.mxu0 %v1431
      %1908 = vmatmul.f32.gmra.mxu0 %v1890
      %v1909 = vpop.f32.mrf.mxu0
      %v1910 = vadd.f32 0.0, %v1909
      %1911 = vdwg.mxu0
      %v1913 = vsel %vm1513, %v1806, 0
      %1915 = vmatpush.msra.mxu0 0.0
      %1916 = vmatpush.msra.mxu0 0.0
      %1917 = vmatpush.msra.mxu0 0.0
      %1918 = vmatpush.msra.mxu0 0.0
      %1919 = vmatpush.msra.mxu0 0.0
      %1920 = vmatpush.msra.mxu0 0.0
      %1921 = vmatpush.msra.mxu0 0.0
      %1922 = vmatpush.msra.mxu0 0.0
      %1923 = vmatpush.msra.mxu0 0.0
      %1924 = vmatpush.msra.mxu0 0.0
      %1925 = vmatpush.msra.mxu0 0.0
      %1926 = vmatpush.msra.mxu0 0.0
      %1927 = vmatpush.msra.mxu0 0.0
      %1928 = vmatpush.msra.mxu0 0.0
      %1929 = vmatpush.msra.mxu0 0.0
      %1930 = vmatpush.msra.mxu0 %v1451
      %1931 = vmatmul.f32.gmra.mxu0 %v1913
      %v1932 = vpop.f32.mrf.mxu0
      %v1933 = vadd.f32 0.0, %v1932
      %1934 = vdwg.mxu0
      %v1936 = vsel %vm1513, %v1807, 0
      %1938 = vmatpush.msra.mxu0 0.0
      %1939 = vmatpush.msra.mxu0 0.0
      %1940 = vmatpush.msra.mxu0 0.0
      %1941 = vmatpush.msra.mxu0 0.0
      %1942 = vmatpush.msra.mxu0 0.0
      %1943 = vmatpush.msra.mxu0 0.0
      %1944 = vmatpush.msra.mxu0 0.0
      %1945 = vmatpush.msra.mxu0 0.0
      %1946 = vmatpush.msra.mxu0 0.0
      %1947 = vmatpush.msra.mxu0 0.0
      %1948 = vmatpush.msra.mxu0 0.0
      %1949 = vmatpush.msra.mxu0 0.0
      %1950 = vmatpush.msra.mxu0 0.0
      %1951 = vmatpush.msra.mxu0 0.0
      %1952 = vmatpush.msra.mxu0 0.0
      %1953 = vmatpush.msra.mxu0 %v1471
      %1954 = vmatmul.f32.gmra.mxu0 %v1936
      %v1955 = vpop.f32.mrf.mxu0
      %v1956 = vadd.f32 0.0, %v1955
      %1957 = vdwg.mxu0
      %v1959 = vsel %vm1513, %v1808, 0
      %1961 = vmatpush.msra.mxu0 0.0
      %1962 = vmatpush.msra.mxu0 0.0
      %1963 = vmatpush.msra.mxu0 0.0
      %1964 = vmatpush.msra.mxu0 0.0
      %1965 = vmatpush.msra.mxu0 0.0
      %1966 = vmatpush.msra.mxu0 0.0
      %1967 = vmatpush.msra.mxu0 0.0
      %1968 = vmatpush.msra.mxu0 0.0
      %1969 = vmatpush.msra.mxu0 0.0
      %1970 = vmatpush.msra.mxu0 0.0
      %1971 = vmatpush.msra.mxu0 0.0
      %1972 = vmatpush.msra.mxu0 0.0
      %1973 = vmatpush.msra.mxu0 0.0
      %1974 = vmatpush.msra.mxu0 0.0
      %1975 = vmatpush.msra.mxu0 0.0
      %1976 = vmatpush.msra.mxu0 %v1491
      %1977 = vmatmul.f32.gmra.mxu0 %v1959
      %v1978 = vpop.f32.mrf.mxu0
      %v1979 = vadd.f32 0.0, %v1978
      %1980 = vdwg.mxu0
      %v1982 = vsel %vm1513, %v1809, 0
      %1984 = vmatpush.msra.mxu0 0.0
      %1985 = vmatpush.msra.mxu0 0.0
      %1986 = vmatpush.msra.mxu0 0.0
      %1987 = vmatpush.msra.mxu0 0.0
      %1988 = vmatpush.msra.mxu0 0.0
      %1989 = vmatpush.msra.mxu0 0.0
      %1990 = vmatpush.msra.mxu0 0.0
      %1991 = vmatpush.msra.mxu0 0.0
      %1992 = vmatpush.msra.mxu0 0.0
      %1993 = vmatpush.msra.mxu0 0.0
      %1994 = vmatpush.msra.mxu0 0.0
      %1995 = vmatpush.msra.mxu0 0.0
      %1996 = vmatpush.msra.mxu0 0.0
      %1997 = vmatpush.msra.mxu0 0.0
      %1998 = vmatpush.msra.mxu0 0.0
      %1999 = vmatpush.msra.mxu0 %v1511
      %2000 = vmatmul.f32.gmra.mxu0 %v1982
      %v2001 = vpop.f32.mrf.mxu0
      %v2002 = vadd.f32 0.0, %v2001
      %2003 = vdwg.mxu0
      %v2004 = vld [vmem:[%s786] sm:$0xff]
      %v2005 = vld [vmem:[%s786 + $0x8] sm:$0xff]
      %v2006 = vld [vmem:[%s786 + $0x10] sm:$0xff]
      %v2007 = vld [vmem:[%s786 + $0x18] sm:$0xff]
      %v2008 = vld [vmem:[%s786 + $0x20] sm:$0xff]
      %v2009 = vld [vmem:[%s786 + $0x28] sm:$0xff]
      %v2010 = vld [vmem:[%s786 + $0x30] sm:$0xff]
      %v2011 = vld [vmem:[%s786 + $0x38] sm:$0xff]
      %v2013 = vsel %vm1513, %v1841, 0
      %2015 = vmatpush.msra.mxu0 0.0
      %2016 = vmatpush.msra.mxu0 0.0
      %2017 = vmatpush.msra.mxu0 0.0
      %2018 = vmatpush.msra.mxu0 0.0
      %2019 = vmatpush.msra.mxu0 0.0
      %2020 = vmatpush.msra.mxu0 0.0
      %2021 = vmatpush.msra.mxu0 0.0
      %2022 = vmatpush.msra.mxu0 0.0
      %2023 = vmatpush.msra.mxu0 0.0
      %2024 = vmatpush.msra.mxu0 0.0
      %2025 = vmatpush.msra.mxu0 0.0
      %2026 = vmatpush.msra.mxu0 0.0
      %2027 = vmatpush.msra.mxu0 0.0
      %2028 = vmatpush.msra.mxu0 0.0
      %2029 = vmatpush.msra.mxu0 0.0
      %2030 = vmatpush.msra.mxu0 %v2004
      %2031 = vmatmul.f32.gmra.mxu0 %v2013
      %v2032 = vpop.f32.mrf.mxu0
      %v2033 = vadd.f32 0.0, %v2032
      %2034 = vdwg.mxu0
      %v2036 = vsel %vm1513, %v1864, 0
      %2038 = vmatpush.msra.mxu0 0.0
      %2039 = vmatpush.msra.mxu0 0.0
      %2040 = vmatpush.msra.mxu0 0.0
      %2041 = vmatpush.msra.mxu0 0.0
      %2042 = vmatpush.msra.mxu0 0.0
      %2043 = vmatpush.msra.mxu0 0.0
      %2044 = vmatpush.msra.mxu0 0.0
      %2045 = vmatpush.msra.mxu0 0.0
      %2046 = vmatpush.msra.mxu0 0.0
      %2047 = vmatpush.msra.mxu0 0.0
      %2048 = vmatpush.msra.mxu0 0.0
      %2049 = vmatpush.msra.mxu0 0.0
      %2050 = vmatpush.msra.mxu0 0.0
      %2051 = vmatpush.msra.mxu0 0.0
      %2052 = vmatpush.msra.mxu0 0.0
      %2053 = vmatpush.msra.mxu0 %v2005
      %2054 = vmatmul.f32.gmra.mxu0 %v2036
      %v2055 = vpop.f32.mrf.mxu0
      %v2056 = vadd.f32 0.0, %v2055
      %2057 = vdwg.mxu0
      %v2059 = vsel %vm1513, %v1887, 0
      %2061 = vmatpush.msra.mxu0 0.0
      %2062 = vmatpush.msra.mxu0 0.0
      %2063 = vmatpush.msra.mxu0 0.0
      %2064 = vmatpush.msra.mxu0 0.0
      %2065 = vmatpush.msra.mxu0 0.0
      %2066 = vmatpush.msra.mxu0 0.0
      %2067 = vmatpush.msra.mxu0 0.0
      %2068 = vmatpush.msra.mxu0 0.0
      %2069 = vmatpush.msra.mxu0 0.0
      %2070 = vmatpush.msra.mxu0 0.0
      %2071 = vmatpush.msra.mxu0 0.0
      %2072 = vmatpush.msra.mxu0 0.0
      %2073 = vmatpush.msra.mxu0 0.0
      %2074 = vmatpush.msra.mxu0 0.0
      %2075 = vmatpush.msra.mxu0 0.0
      %2076 = vmatpush.msra.mxu0 %v2006
      %2077 = vmatmul.f32.gmra.mxu0 %v2059
      %v2078 = vpop.f32.mrf.mxu0
      %v2079 = vadd.f32 0.0, %v2078
      %2080 = vdwg.mxu0
      %v2082 = vsel %vm1513, %v1910, 0
      %2084 = vmatpush.msra.mxu0 0.0
      %2085 = vmatpush.msra.mxu0 0.0
      %2086 = vmatpush.msra.mxu0 0.0
      %2087 = vmatpush.msra.mxu0 0.0
      %2088 = vmatpush.msra.mxu0 0.0
      %2089 = vmatpush.msra.mxu0 0.0
      %2090 = vmatpush.msra.mxu0 0.0
      %2091 = vmatpush.msra.mxu0 0.0
      %2092 = vmatpush.msra.mxu0 0.0
      %2093 = vmatpush.msra.mxu0 0.0
      %2094 = vmatpush.msra.mxu0 0.0
      %2095 = vmatpush.msra.mxu0 0.0
      %2096 = vmatpush.msra.mxu0 0.0
      %2097 = vmatpush.msra.mxu0 0.0
      %2098 = vmatpush.msra.mxu0 0.0
      %2099 = vmatpush.msra.mxu0 %v2007
      %2100 = vmatmul.f32.gmra.mxu0 %v2082
      %v2101 = vpop.f32.mrf.mxu0
      %v2102 = vadd.f32 0.0, %v2101
      %2103 = vdwg.mxu0
      %v2105 = vsel %vm1513, %v1933, 0
      %2107 = vmatpush.msra.mxu0 0.0
      %2108 = vmatpush.msra.mxu0 0.0
      %2109 = vmatpush.msra.mxu0 0.0
      %2110 = vmatpush.msra.mxu0 0.0
      %2111 = vmatpush.msra.mxu0 0.0
      %2112 = vmatpush.msra.mxu0 0.0
      %2113 = vmatpush.msra.mxu0 0.0
      %2114 = vmatpush.msra.mxu0 0.0
      %2115 = vmatpush.msra.mxu0 0.0
      %2116 = vmatpush.msra.mxu0 0.0
      %2117 = vmatpush.msra.mxu0 0.0
      %2118 = vmatpush.msra.mxu0 0.0
      %2119 = vmatpush.msra.mxu0 0.0
      %2120 = vmatpush.msra.mxu0 0.0
      %2121 = vmatpush.msra.mxu0 0.0
      %2122 = vmatpush.msra.mxu0 %v2008
      %2123 = vmatmul.f32.gmra.mxu0 %v2105
      %v2124 = vpop.f32.mrf.mxu0
      %v2125 = vadd.f32 0.0, %v2124
      %2126 = vdwg.mxu0
      %v2128 = vsel %vm1513, %v1956, 0
      %2130 = vmatpush.msra.mxu0 0.0
      %2131 = vmatpush.msra.mxu0 0.0
      %2132 = vmatpush.msra.mxu0 0.0
      %2133 = vmatpush.msra.mxu0 0.0
      %2134 = vmatpush.msra.mxu0 0.0
      %2135 = vmatpush.msra.mxu0 0.0
      %2136 = vmatpush.msra.mxu0 0.0
      %2137 = vmatpush.msra.mxu0 0.0
      %2138 = vmatpush.msra.mxu0 0.0
      %2139 = vmatpush.msra.mxu0 0.0
      %2140 = vmatpush.msra.mxu0 0.0
      %2141 = vmatpush.msra.mxu0 0.0
      %2142 = vmatpush.msra.mxu0 0.0
      %2143 = vmatpush.msra.mxu0 0.0
      %2144 = vmatpush.msra.mxu0 0.0
      %2145 = vmatpush.msra.mxu0 %v2009
      %2146 = vmatmul.f32.gmra.mxu0 %v2128
      %v2147 = vpop.f32.mrf.mxu0
      %v2148 = vadd.f32 0.0, %v2147
      %2149 = vdwg.mxu0
      %v2151 = vsel %vm1513, %v1979, 0
      %2153 = vmatpush.msra.mxu0 0.0
      %2154 = vmatpush.msra.mxu0 0.0
      %2155 = vmatpush.msra.mxu0 0.0
      %2156 = vmatpush.msra.mxu0 0.0
      %2157 = vmatpush.msra.mxu0 0.0
      %2158 = vmatpush.msra.mxu0 0.0
      %2159 = vmatpush.msra.mxu0 0.0
      %2160 = vmatpush.msra.mxu0 0.0
      %2161 = vmatpush.msra.mxu0 0.0
      %2162 = vmatpush.msra.mxu0 0.0
      %2163 = vmatpush.msra.mxu0 0.0
      %2164 = vmatpush.msra.mxu0 0.0
      %2165 = vmatpush.msra.mxu0 0.0
      %2166 = vmatpush.msra.mxu0 0.0
      %2167 = vmatpush.msra.mxu0 0.0
      %2168 = vmatpush.msra.mxu0 %v2010
      %2169 = vmatmul.f32.gmra.mxu0 %v2151
      %v2170 = vpop.f32.mrf.mxu0
      %v2171 = vadd.f32 0.0, %v2170
      %2172 = vdwg.mxu0
      %v2174 = vsel %vm1513, %v2002, 0
      %2176 = vmatpush.msra.mxu0 0.0
      %2177 = vmatpush.msra.mxu0 0.0
      %2178 = vmatpush.msra.mxu0 0.0
      %2179 = vmatpush.msra.mxu0 0.0
      %2180 = vmatpush.msra.mxu0 0.0
      %2181 = vmatpush.msra.mxu0 0.0
      %2182 = vmatpush.msra.mxu0 0.0
      %2183 = vmatpush.msra.mxu0 0.0
      %2184 = vmatpush.msra.mxu0 0.0
      %2185 = vmatpush.msra.mxu0 0.0
      %2186 = vmatpush.msra.mxu0 0.0
      %2187 = vmatpush.msra.mxu0 0.0
      %2188 = vmatpush.msra.mxu0 0.0
      %2189 = vmatpush.msra.mxu0 0.0
      %2190 = vmatpush.msra.mxu0 0.0
      %2191 = vmatpush.msra.mxu0 %v2011
      %2192 = vmatmul.f32.gmra.mxu0 %v2174
      %v2193 = vpop.f32.mrf.mxu0
      %v2194 = vadd.f32 0.0, %v2193
      %2195 = vdwg.mxu0
      %v2196 = vadd.f32 %v2033, %v2079
      %v2197 = vadd.f32 %v2056, %v2102
      %v2198 = vadd.f32 %v2196, %v2125
      %v2199 = vadd.f32 %v2197, %v2148
      %v2200 = vadd.f32 %v2198, %v2171
      %v2201 = vadd.f32 %v2199, %v2194
      %v2202 = vld [vmem:[%s789] sm:$0x1]
      %v2204 = vperm.slane %v2202, 0
      %v2206 = vadd.f32 %v2200, %v2204
      %v2207 = vadd.f32 %v2201, %v2204
      %v2208 = vadd.f32 %v832, %v2206
      %v2209 = vadd.f32 %v833, %v2207
      %v2210 = vld [vmem:[%s808] sm:$0x1]
      %v2211 = vld [vmem:[%s811] sm:$0x1]
      %v2212 = vsel %vm898, %v2208, 0.0
      %2213 = vadd.xlane.f32.xlu0 %v2212
      %v2214 = vpop.xlane.xlu0 %2213
      %v2215 = vsel %vm898, %v2209, 0.0
      %2216 = vadd.xlane.f32.xlu0 %v2215
      %v2217 = vpop.xlane.xlu0 %2216
      %v2218 = vrcp.pop 32.0
      %v2219 = vmul.f32 32.0, %v2218
      %v2220 = vsub.f32 1.0, %v2219
      %v2221 = vmul.f32 %v2218, %v2220
      %v2222 = vadd.f32 %v2218, %v2221
      %vm2223 = vweird.f32 %v2218
      %v2224 = vsel %vm2223, %v2218, %v2222
      %v2225 = vmul.f32 %v2214, %v2224
      %v2226 = vmul.f32 %v2217, %v2224
      %v2227 = vsub.f32 %v2208, %v2225
      %v2228 = vsub.f32 %v2209, %v2226
      %v2229 = vmul.f32 %v2227, %v2227
      %v2230 = vmul.f32 %v2228, %v2228
      %v2231 = vsel %vm898, %v2229, 0.0
      %2232 = vadd.xlane.f32.xlu0 %v2231
      %v2233 = vpop.xlane.xlu0 %2232
      %v2234 = vsel %vm898, %v2230, 0.0
      %2235 = vadd.xlane.f32.xlu0 %v2234
      %v2236 = vpop.xlane.xlu0 %2235
      %v2237 = vmul.f32 %v2233, %v2224
      %v2238 = vmul.f32 %v2236, %v2224
      %v2239 = vadd.f32 %v2237, 1e-05
      %v2240 = vadd.f32 %v2238, 1e-05
      %v2241 = vrsqrt.pop %v2239
      %v2242 = vmul.f32 %v2241, %v2239
      %v2243 = vmul.f32 %v2242, %v2241
      %v2244 = vmul.f32 0.5, %v2243
      %v2245 = vsub.f32 1.5, %v2244
      %v2246 = vmul.f32 %v2241, %v2245
      %vm2247 = vweird.f32 %v2239
      %vm2248 = vweird.f32 %v2241
      %vm2249 = vmor %vm2247, %vm2248
      %v2250 = vsel %vm2249, %v2241, %v2246
      %v2251 = vrsqrt.pop %v2240
      %v2252 = vmul.f32 %v2251, %v2240
      %v2253 = vmul.f32 %v2252, %v2251
      %v2254 = vmul.f32 0.5, %v2253
      %v2255 = vsub.f32 1.5, %v2254
      %v2256 = vmul.f32 %v2251, %v2255
      %vm2257 = vweird.f32 %v2240
      %vm2258 = vweird.f32 %v2251
      %vm2259 = vmor %vm2257, %vm2258
      %v2260 = vsel %vm2259, %v2251, %v2256
      %v2261 = vmul.f32 %v2227, %v2250
      %v2262 = vmul.f32 %v2228, %v2260
      %v2264 = vperm.slane %v2210, 0
      %v2266 = vmul.f32 %v2261, %v2264
      %v2267 = vmul.f32 %v2262, %v2264
      %v2269 = vperm.slane %v2211, 0
      %v2271 = vadd.f32 %v2266, %v2269
      %v2272 = vadd.f32 %v2267, %v2269
      %v2273 = vld [vmem:[%s794] sm:$0xff]
      %v2274 = vld [vmem:[%s794 + $0x8] sm:$0xff]
      %v2275 = vld [vmem:[%s794 + $0x10] sm:$0xff]
      %v2276 = vld [vmem:[%s794 + $0x18] sm:$0xff]
      %v2277 = vld [vmem:[%s794 + $0x20] sm:$0xff]
      %v2278 = vld [vmem:[%s794 + $0x28] sm:$0xff]
      %v2279 = vld [vmem:[%s794 + $0x30] sm:$0xff]
      %v2280 = vld [vmem:[%s794 + $0x38] sm:$0xff]
      %v2281 = vld [vmem:[%s797] sm:$0x1]
      %v2283 = vperm.slane %v2281, 0
      %v2286 = vsel %vm898, %v2271, 0
      %2288 = vmatpush.msra.mxu0 0.0
      %2289 = vmatpush.msra.mxu0 0.0
      %2290 = vmatpush.msra.mxu0 0.0
      %2291 = vmatpush.msra.mxu0 0.0
      %2292 = vmatpush.msra.mxu0 0.0
      %2293 = vmatpush.msra.mxu0 0.0
      %2294 = vmatpush.msra.mxu0 0.0
      %2295 = vmatpush.msra.mxu0 0.0
      %2296 = vmatpush.msra.mxu0 0.0
      %2297 = vmatpush.msra.mxu0 0.0
      %2298 = vmatpush.msra.mxu0 0.0
      %2299 = vmatpush.msra.mxu0 0.0
      %2300 = vmatpush.msra.mxu0 %v2276
      %2301 = vmatpush.msra.mxu0 %v2275
      %2302 = vmatpush.msra.mxu0 %v2274
      %2303 = vmatpush.msra.mxu0 %v2273
      %2304 = vmatmul.f32.gmra.mxu0 %v2286
      %v2305 = vpop.f32.mrf.mxu0
      %v2306 = vadd.f32 %v2283, %v2305
      %2307 = vdwg.mxu0
      %v2309 = vsel %vm898, %v2272, 0
      %2311 = vmatpush.msra.mxu0 0.0
      %2312 = vmatpush.msra.mxu0 0.0
      %2313 = vmatpush.msra.mxu0 0.0
      %2314 = vmatpush.msra.mxu0 0.0
      %2315 = vmatpush.msra.mxu0 0.0
      %2316 = vmatpush.msra.mxu0 0.0
      %2317 = vmatpush.msra.mxu0 0.0
      %2318 = vmatpush.msra.mxu0 0.0
      %2319 = vmatpush.msra.mxu0 0.0
      %2320 = vmatpush.msra.mxu0 0.0
      %2321 = vmatpush.msra.mxu0 0.0
      %2322 = vmatpush.msra.mxu0 0.0
      %2323 = vmatpush.msra.mxu0 %v2280
      %2324 = vmatpush.msra.mxu0 %v2279
      %2325 = vmatpush.msra.mxu0 %v2278
      %2326 = vmatpush.msra.mxu0 %v2277
      %2327 = vmatmul.f32.gmra.mxu0 %v2309
      %v2328 = vpop.f32.mrf.mxu0
      %v2329 = vadd.f32 %v2283, %v2328
      %2330 = vdwg.mxu0
      %v2331 = vmax.f32 %v2306, 0.0
      %v2332 = vmax.f32 %v2329, 0.0
      %v2333 = vld [vmem:[%s802] sm:$0xff]
      %v2334 = vld [vmem:[%s802 + $0x8] sm:$0xff]
      %v2335 = vld [vmem:[%s802 + $0x10] sm:$0xff]
      %v2336 = vld [vmem:[%s802 + $0x18] sm:$0xff]
      %v2337 = vld [vmem:[%s802 + $0x20] sm:$0xff]
      %v2338 = vld [vmem:[%s802 + $0x28] sm:$0xff]
      %v2339 = vld [vmem:[%s802 + $0x30] sm:$0xff]
      %v2340 = vld [vmem:[%s802 + $0x38] sm:$0xff]
      %v2341 = vld [vmem:[%s802 + $0x40] sm:$0xff]
      %v2342 = vld [vmem:[%s802 + $0x48] sm:$0xff]
      %v2343 = vld [vmem:[%s802 + $0x50] sm:$0xff]
      %v2344 = vld [vmem:[%s802 + $0x58] sm:$0xff]
      %v2345 = vld [vmem:[%s802 + $0x60] sm:$0xff]
      %v2346 = vld [vmem:[%s802 + $0x68] sm:$0xff]
      %v2347 = vld [vmem:[%s802 + $0x70] sm:$0xff]
      %v2348 = vld [vmem:[%s802 + $0x78] sm:$0xff]
      %v2349 = vld [vmem:[%s805] sm:$0x1]
      %v2351 = vperm.slane %v2349, 0
      %vm2353 = vcmask 523264
      %v2355 = vsel %vm2353, %v2331, 0
      %2357 = vmatpush.msra.mxu0 0.0
      %2358 = vmatpush.msra.mxu0 0.0
      %2359 = vmatpush.msra.mxu0 0.0
      %2360 = vmatpush.msra.mxu0 0.0
      %2361 = vmatpush.msra.mxu0 0.0
      %2362 = vmatpush.msra.mxu0 0.0
      %2363 = vmatpush.msra.mxu0 0.0
      %2364 = vmatpush.msra.mxu0 0.0
      %2365 = vmatpush.msra.mxu0 %v2340
      %2366 = vmatpush.msra.mxu0 %v2339
      %2367 = vmatpush.msra.mxu0 %v2338
      %2368 = vmatpush.msra.mxu0 %v2337
      %2369 = vmatpush.msra.mxu0 %v2336
      %2370 = vmatpush.msra.mxu0 %v2335
      %2371 = vmatpush.msra.mxu0 %v2334
      %2372 = vmatpush.msra.mxu0 %v2333
      %2373 = vmatmul.f32.gmra.mxu0 %v2355
      %v2374 = vpop.f32.mrf.mxu0
      %v2375 = vadd.f32 %v2351, %v2374
      %2376 = vdwg.mxu0
      %v2378 = vsel %vm2353, %v2332, 0
      %2380 = vmatpush.msra.mxu0 0.0
      %2381 = vmatpush.msra.mxu0 0.0
      %2382 = vmatpush.msra.mxu0 0.0
      %2383 = vmatpush.msra.mxu0 0.0
      %2384 = vmatpush.msra.mxu0 0.0
      %2385 = vmatpush.msra.mxu0 0.0
      %2386 = vmatpush.msra.mxu0 0.0
      %2387 = vmatpush.msra.mxu0 0.0
      %2388 = vmatpush.msra.mxu0 %v2348
      %2389 = vmatpush.msra.mxu0 %v2347
      %2390 = vmatpush.msra.mxu0 %v2346
      %2391 = vmatpush.msra.mxu0 %v2345
      %2392 = vmatpush.msra.mxu0 %v2344
      %2393 = vmatpush.msra.mxu0 %v2343
      %2394 = vmatpush.msra.mxu0 %v2342
      %2395 = vmatpush.msra.mxu0 %v2341
      %2396 = vmatmul.f32.gmra.mxu0 %v2378
      %v2397 = vpop.f32.mrf.mxu0
      %v2398 = vadd.f32 %v2351, %v2397
      %2399 = vdwg.mxu0
      %v2400 = vadd.f32 %v2271, %v2375
      %v2401 = vadd.f32 %v2272, %v2398
      %v2402 = vld [vmem:[%s814] sm:$0x1]
      %v2403 = vld [vmem:[%s817] sm:$0x1]
      %v2404 = vsel %vm898, %v2400, 0.0
      %2405 = vadd.xlane.f32.xlu0 %v2404
      %v2406 = vpop.xlane.xlu0 %2405
      %v2407 = vsel %vm898, %v2401, 0.0
      %2408 = vadd.xlane.f32.xlu0 %v2407
      %v2409 = vpop.xlane.xlu0 %2408
      %v2410 = vmul.f32 %v2406, %v2224
      %v2411 = vmul.f32 %v2409, %v2224
      %v2412 = vsub.f32 %v2400, %v2410
      %v2413 = vsub.f32 %v2401, %v2411
      %v2414 = vmul.f32 %v2412, %v2412
      %v2415 = vmul.f32 %v2413, %v2413
      %v2416 = vsel %vm898, %v2414, 0.0
      %2417 = vadd.xlane.f32.xlu0 %v2416
      %v2418 = vpop.xlane.xlu0 %2417
      %v2419 = vsel %vm898, %v2415, 0.0
      %2420 = vadd.xlane.f32.xlu0 %v2419
      %v2421 = vpop.xlane.xlu0 %2420
      %v2422 = vmul.f32 %v2418, %v2224
      %v2423 = vmul.f32 %v2421, %v2224
      %v2424 = vadd.f32 %v2422, 1e-05
      %v2425 = vadd.f32 %v2423, 1e-05
      %v2426 = vrsqrt.pop %v2424
      %v2427 = vmul.f32 %v2426, %v2424
      %v2428 = vmul.f32 %v2427, %v2426
      %v2429 = vmul.f32 0.5, %v2428
      %v2430 = vsub.f32 1.5, %v2429
      %v2431 = vmul.f32 %v2426, %v2430
      %vm2432 = vweird.f32 %v2424
      %vm2433 = vweird.f32 %v2426
      %vm2434 = vmor %vm2432, %vm2433
      %v2435 = vsel %vm2434, %v2426, %v2431
      %v2436 = vrsqrt.pop %v2425
      %v2437 = vmul.f32 %v2436, %v2425
      %v2438 = vmul.f32 %v2437, %v2436
      %v2439 = vmul.f32 0.5, %v2438
      %v2440 = vsub.f32 1.5, %v2439
      %v2441 = vmul.f32 %v2436, %v2440
      %vm2442 = vweird.f32 %v2425
      %vm2443 = vweird.f32 %v2436
      %vm2444 = vmor %vm2442, %vm2443
      %v2445 = vsel %vm2444, %v2436, %v2441
      %v2446 = vmul.f32 %v2412, %v2435
      %v2447 = vmul.f32 %v2413, %v2445
      %v2449 = vperm.slane %v2402, 0
      %v2451 = vmul.f32 %v2446, %v2449
      %v2452 = vmul.f32 %v2447, %v2449
      %v2454 = vperm.slane %v2403, 0
      %v2456 = vadd.f32 %v2451, %v2454
      %v2457 = vadd.f32 %v2452, %v2454
      %2458 = vst.msk [vmem:[#allocation2] sm:$0xff] %vm898, %v2456
      %2459 = vst.msk [vmem:[#allocation2 + $0x8] sm:$0xff] %vm898, %v2457
      %p2460 = scmp.eq.s32.totalorder %s30, 1
      // Predicated region
      $region93: #{transformer_encoder_pallas.1} parent=87 // pred_check
        %p2461 = pneg %p2460
      $region94: #{transformer_encoder_pallas.1} parent=87 // pred_check_branch
        %2463 = sbr.rel (%p2461) target = $region96
      $region95: #{transformer_encoder_pallas.1} parent=87 // pred_region
        %2464 = vst.msk [vmem:[%s17] sm:$0xff] %vm898, %v2456
        %2465 = vst.msk [vmem:[%s17 + $0x8] sm:$0xff] %vm898, %v2457
      $region96: #{transformer_encoder_pallas.1} parent=87 // pred_fallthru
        _
      %p2466 = scmp.lt.s32.totalorder %s30, 1
      %s2467 = scalar_select %p2466, %s30, 1
      %s2468 = smul.addr %s2467, 2
      %s2469 = smul.addr %s2468, 8
      %s2470 = scalar_lea.vmem %s18, %s2469
      // Predicated region
      $region97: #{transformer_encoder_pallas.1} parent=87 // pred_check
        %p2471 = pneg %p480
      $region98: #{transformer_encoder_pallas.1} parent=87 // pred_check_branch
        %2473 = sbr.rel (%p2471) target = $region100
      $region99: #{transformer_encoder_pallas.1} parent=87 // pred_region
        _
      $region100: #{transformer_encoder_pallas.1} parent=87 // pred_fallthru
        _
      // Predicated region
      $region101: #{transformer_encoder_pallas.1} parent=87 // pred_check
        %p2474 = pneg %p506
      $region102: #{transformer_encoder_pallas.1} parent=87 // pred_check_branch
        %2476 = sbr.rel (%p2474) target = $region104
      $region103: #{transformer_encoder_pallas.1} parent=87 // pred_region
        _
      $region104: #{transformer_encoder_pallas.1} parent=87 // pred_fallthru
        _
      // Predicated region
      $region105: #{transformer_encoder_pallas.1} parent=87 // pred_check
        %p2477 = pneg %p480
      $region106: #{transformer_encoder_pallas.1} parent=87 // pred_check_branch
        %2479 = sbr.rel (%p2477) target = $region108
      $region107: #{transformer_encoder_pallas.1} parent=87 // pred_region
        _
      $region108: #{transformer_encoder_pallas.1} parent=87 // pred_fallthru
        _
    $region88: #{transformer_encoder_pallas.1} parent=5 // pred_fallthru
      _
    %p2480 = scmp.le.s32.totalorder 2, %s25
    // Predicated region
    $region109: #{transformer_encoder_pallas.1} parent=5 // pred_check
      %p2481 = pneg %p2480
    $region110: #{transformer_encoder_pallas.1} parent=5 // pred_check_branch
      %2483 = sbr.rel (%p2481) target = $region112
    $region111: #{transformer_encoder_pallas.1} parent=5 // pred_region
      %s2484 = ssub.s32 %s25, 2
      // Predicated region
      $region113: #{transformer_encoder_pallas.1} parent=111 // pred_check
        %p2485 = pneg %p512
      $region114: #{transformer_encoder_pallas.1} parent=111 // pred_check_branch
        %2487 = sbr.rel (%p2485) target = $region116
      $region115: #{transformer_encoder_pallas.1} parent=111 // pred_region
        %p2488 = scmp.lt.s32.totalorder %s31, 1
        %s2489 = scalar_select %p2488, %s31, 1
        %s2490 = smul.addr %s2489, 2
        %s2491 = smul.addr %s2490, 8
        %s2492 = scalar_lea.vmem %s18, %s2491
      $region116: #{transformer_encoder_pallas.1} parent=111 // pred_fallthru
        _
    $region112: #{transformer_encoder_pallas.1} parent=5 // pred_fallthru
      _
  $region6: #{transformer_encoder_pallas.1} parent=0 // loop_footer
    %s29 = sadd.s32 1, %s25
  $region7: #{transformer_encoder_pallas.1} parent=0 // loop_footer_branch
    %24 = sbr.rel target = $region3
  $region8: #{transformer_encoder_pallas.1} parent=0 // loop_exit
    _

</llo_original>
